<compile_context>
chip_gen: v5e
topology: v5e:2x2
jax: 0.10.0
libtpu: 0.0.40
codegen_flags: <defaults>
</compile_context>

<pallas_src>
import jax
import jax.numpy as jnp
import numpy as np
from jax.experimental import pallas as pl
from jax.experimental.pallas import tpu as pltpu


# ----------------------------------------------------------------------------
# Pallas kernel
# ----------------------------------------------------------------------------
def lstm_ae_kernel(x_ref, wxe_ref, whe_ref, be_ref,
                   wxhd_ref, bd_ref, dw_hbm_ref, dbias_ref,
                   out_ref, dw_vmem, dma_sem):
    """Fused encoder-LSTM -> decoder-LSTM -> dense forward pass.

    x_ref      : (L, V)       input sequence (batch=1 squeezed)
    wxe_ref    : (V, 4H)      encoder input->gates weights, lanes [i|f|o|g]
    whe_ref    : (4H, 4H)     encoder hidden->gates weights, rows >= H are 0
    be_ref     : (1, 4H)      encoder combined bias (b_ih + b_hh), reordered
    wxhd_ref   : (8H, 4H)     decoder [input; hidden]->gates weights stacked:
                              rows [0,H)=W_ih, [H,4H)=0, [4H,5H)=W_hh, rest 0
    bd_ref     : (1, 4H)      decoder combined bias
    dw_hbm_ref : (NG, 4H, P)  dense W.T, lane-packed (4 timesteps per 128-row
                              group, NO zero rows), left in HBM (pl.ANY)
    dbias_ref  : (1, P)       dense bias (lane padded with zeros)
    out_ref    : (1, P)       output (first L*V lanes valid)
    dw_vmem    : (NG, 4H, P)  VMEM staging buffer for dw (DMA'd manually)
    dma_sem    : DMA semaphore for the dw copy

    State vectors (h, c) are kept 4H lanes wide; only lanes [0, H) are
    meaningful.  Garbage lanes never leak: every weight row they multiply is
    zero, and the dense packing selects only lanes [0, H) of each hidden.
    """
    L, _V = x_ref.shape
    G = whe_ref.shape[1]          # 4H (128 for H=32)
    H = G // 4
    TPG = G // H                  # timesteps packed per dense group (4)
    NG = L // TPG

    # --- overlap the dense-weight DMA with the whole recurrence -------------
    dw_copy = pltpu.make_async_copy(dw_hbm_ref, dw_vmem, dma_sem)
    dw_copy.start()

    # --- hoisted encoder input projection + bias: one (L,V)x(V,4H) matmul ---
    xproj = (jnp.dot(x_ref[...], wxe_ref[...],
                     preferred_element_type=jnp.float32) + be_ref[...])

    lane = jax.lax.broadcasted_iota(jnp.int32, (1, G), 1)
    # sigmoid(x) = 0.5*tanh(0.5*x) + 0.5 on the i/f/o lanes, plain tanh on g:
    # one EUP tanh per pre-activation instead of sigmoid(exp+recip) + tanh.
    ab = jnp.where(lane < 3 * H, 0.5, 1.0).astype(jnp.float32)
    cc = jnp.where(lane < 3 * H, 0.5, 0.0).astype(jnp.float32)

    def activate(pre):
        return ab * jnp.tanh(ab * pre) + cc

    def cell_update(act, c):
        # act lanes: [i | f | o | g]; align f/o/g onto lanes [0, H) via XLU
        # rolls so the elementwise LSTM math never slices sub-128 lanes.
        f_al = pltpu.roll(act, 3 * H, axis=1)
        o_al = pltpu.roll(act, 2 * H, axis=1)
        g_al = pltpu.roll(act, H, axis=1)
        c_new = f_al * c + act * g_al           # lanes [0,H): f*c + i*g
        h_new = o_al * jnp.tanh(c_new)          # lanes [0,H): o*tanh(c_new)
        return h_new, c_new

    zero = jnp.zeros((1, G), jnp.float32)
    eh, ec, dh, dc = zero, zero, zero, zero
    bd = bd_ref[...]                            # hoisted: read once
    dhs = []                                    # decoder hiddens (registers)

    # NOTE: `hidden_rep` in the PyTorch forward is computed but never used, so
    # it is intentionally not materialized here.
    # L is small & static -> fully unrolled; decoder consumes the encoder
    # output of the same timestep, so the two recurrences stay fused.
    for t in range(L):
        # encoder cell: 1 matmul (input projection hoisted above)
        e_pre = (xproj[t:t + 1, :]
                 + jnp.dot(eh, whe_ref[...],
                           preferred_element_type=jnp.float32))
        eh, ec = cell_update(activate(e_pre), ec)

        # decoder cell: 1 fused matmul, LHS = [encoder hidden | decoder hidden]
        d_lhs = jnp.concatenate([eh, dh], axis=1)          # (1, 2G)
        d_pre = bd + jnp.dot(d_lhs, wxhd_ref[...],
                             preferred_element_type=jnp.float32)
        dh, dc = cell_update(activate(d_pre), dc)
        dhs.append(dh)

    # --- dense layer (off the recurrence critical path) ---------------------
    dw_copy.wait()                              # DMA hidden behind the loop
    acc = dbias_ref[...]
    for g in range(NG):
        # pack 4 timesteps' valid H lanes into one lane-dense (1, 128) vector
        packed = jnp.zeros((1, G), jnp.float32)
        for j in range(TPG):
            v = dhs[g * TPG + j]
            if j:
                v = pltpu.roll(v, j * H, axis=1)   # lanes [0,H) -> [jH,(j+1)H)
            sel = (lane >= j * H) & (lane < (j + 1) * H)
            packed = jnp.where(sel, v, packed)
        acc = acc + jnp.dot(packed, dw_vmem[g],
                            preferred_element_type=jnp.float32)
    out_ref[...] = acc


# ----------------------------------------------------------------------------
# Parameter setup (PyTorch-shaped) + one-time packing + glue
# ----------------------------------------------------------------------------
def init_params(key, vars_dim, hidden_dim, input_length):
    H, V, L = hidden_dim, vars_dim, input_length
    ks = jax.random.split(key, 10)
    k_lstm = 1.0 / np.sqrt(H)
    k_lin = 1.0 / np.sqrt(H * L)

    def u(k, shape, bound):
        return jax.random.uniform(k, shape, jnp.float32, -bound, bound)

    return dict(
        enc_W_ih=u(ks[0], (4 * H, V), k_lstm),
        enc_W_hh=u(ks[1], (4 * H, H), k_lstm),
        enc_b_ih=u(ks[2], (4 * H,), k_lstm),
        enc_b_hh=u(ks[3], (4 * H,), k_lstm),
        dec_W_ih=u(ks[4], (4 * H, H), k_lstm),
        dec_W_hh=u(ks[5], (4 * H, H), k_lstm),
        dec_b_ih=u(ks[6], (4 * H,), k_lstm),
        dec_b_hh=u(ks[7], (4 * H,), k_lstm),
        dense_W=u(ks[8], (L * V, L * H), k_lin),
        dense_b=u(ks[9], (L * V,), k_lin),
    )


def pack_params(params, vars_dim, hidden_dim, input_length):
    """Pack/transposed/padded weights ONCE (not per forward call)."""
    H, V, L = hidden_dim, vars_dim, input_length
    G = 4 * H
    # The roll / lane-mask / packing scheme assumes one lane tile per state.
    if G != 128:
        raise ValueError("packing assumes 4*hidden_dim == 128 (one lane tile)")
    TPG = G // H                       # timesteps per dense group (= 4)
    if L % TPG != 0:
        raise ValueError("input_length must be a multiple of 4 for dense packing")
    NG = L // TPG
    P = ((L * V + 127) // 128) * 128   # lane-dense padded dense-output width

    def fuse(W):
        # PyTorch (4H, in) with gate rows [i; f; g; o]
        #   -> (in, 4H) with lane blocks [i | f | o | g]
        Wi, Wf, Wg, Wo = W[0:H], W[H:2 * H], W[2 * H:3 * H], W[3 * H:4 * H]
        return jnp.concatenate([Wi, Wf, Wo, Wg], axis=0).T

    def fuse_bias(b_ih, b_hh):
        b = b_ih + b_hh
        bi, bf, bg, bo = b[0:H], b[H:2 * H], b[2 * H:3 * H], b[3 * H:4 * H]
        return jnp.concatenate([bi, bf, bo, bg]).reshape(1, G)

    def pad_rows(W):  # (H, G) -> (G, G): zero rows so garbage h-lanes vanish
        return jnp.pad(W, ((0, G - W.shape[0]), (0, 0)))

    wxe = fuse(params["enc_W_ih"])                         # (V, 4H)
    whe = pad_rows(fuse(params["enc_W_hh"]))               # (4H, 4H)
    be = fuse_bias(params["enc_b_ih"], params["enc_b_hh"])
    wxd = pad_rows(fuse(params["dec_W_ih"]))               # (4H, 4H)
    whd = pad_rows(fuse(params["dec_W_hh"]))               # (4H, 4H)
    wxhd = jnp.concatenate([wxd, whd], axis=0)             # (8H, 4H), K = 256
    bd = fuse_bias(params["dec_b_ih"], params["dec_b_hh"])

    # Dense W.T lane-packed: group g, row j*H + h  ==  W.T row (g*TPG+j)*H + h.
    # No zero rows -> 4x less HBM traffic than the per-timestep padded layout.
    WT = params["dense_W"].T                               # (L*H, L*V)
    dw = jnp.pad(WT, ((0, 0), (0, P - L * V))).reshape(NG, G, P)
    dbias = jnp.pad(params["dense_b"], (0, P - L * V)).reshape(1, P)

    to_f32 = lambda a: a.astype(jnp.float32)
    return dict(wxe=to_f32(wxe), whe=to_f32(whe), be=to_f32(be),
                wxhd=to_f32(wxhd), bd=to_f32(bd),
                dw=to_f32(dw), dbias=to_f32(dbias))


def _full_spec(shape):
    nd = len(shape)
    return pl.BlockSpec(shape, lambda i, _nd=nd: (0,) * _nd)


@jax.jit
def lstm_autoencoder_forward(packed, x):
    """x: (L, 1, V) float32 -> (L*V,) float32 (matches the PyTorch module)."""
    L, B, V = x.shape
    G = packed["whe"].shape[0]          # 4H
    P = packed["dbias"].shape[1]
    NG = packed["dw"].shape[0]
    x2d = x.reshape(L * B, V).astype(jnp.float32)   # batch=1 squeezed

    args = (x2d, packed["wxe"], packed["whe"], packed["be"],
            packed["wxhd"], packed["bd"], packed["dw"], packed["dbias"])

    in_specs = [_full_spec(a.shape) for a in args[:6]]
    in_specs.append(pl.BlockSpec(memory_space=pl.ANY))   # dw: raw HBM ref
    in_specs.append(_full_spec(packed["dbias"].shape))

    out = pl.pallas_call(
        lstm_ae_kernel,
        grid=(1,),
        in_specs=in_specs,
        out_specs=_full_spec((1, P)),
        out_shape=jax.ShapeDtypeStruct((1, P), jnp.float32),
        scratch_shapes=[
            pltpu.VMEM((NG, G, P), jnp.float32),   # dw staging buffer
            pltpu.SemaphoreType.DMA,               # dw copy completion
        ],
        compiler_params=pltpu.CompilerParams(
            dimension_semantics=("arbitrary",)),
    )(*args)
    return out[0, :L * V]


# ----------------------------------------------------------------------------
# Pure numpy reference (mirrors the PyTorch forward) for validation
# ----------------------------------------------------------------------------
def reference_forward(params, x, hidden_dim):
    H = hidden_dim
    xn = np.asarray(x, dtype=np.float32)  # (L, 1, V)

    def sigmoid(z):
        return 1.0 / (1.0 + np.exp(-z))

    def run_lstm(seq, W_ih, W_hh, b_ih, b_hh):
        Ls, B, _ = seq.shape
        h = np.zeros((B, H), np.float32)
        c = np.zeros((B, H), np.float32)
        outs = []
        for t in range(Ls):
            g = seq[t] @ W_ih.T + h @ W_hh.T + b_ih + b_hh
            i = sigmoid(g[:, 0:H])
            f = sigmoid(g[:, H:2 * H])
            gg = np.tanh(g[:, 2 * H:3 * H])
            o = sigmoid(g[:, 3 * H:4 * H])
            c = f * c + i * gg
            h = o * np.tanh(c)
            outs.append(h.copy())
        return np.stack(outs)  # (L, B, H)

    p = {k: np.asarray(v) for k, v in params.items()}
    enc = run_lstm(xn, p["enc_W_ih"], p["enc_W_hh"], p["enc_b_ih"], p["enc_b_hh"])
    dec = run_lstm(enc, p["dec_W_ih"], p["dec_W_hh"], p["dec_b_ih"], p["dec_b_hh"])
    return dec.reshape(-1) @ p["dense_W"].T + p["dense_b"]


# ----------------------------------------------------------------------------
if __name__ == "__main__":
    VARS_DIM, HIDDEN_DIM, INPUT_LENGTH = 8, 32, 8

    key = jax.random.PRNGKey(0)
    k_params, k_x = jax.random.split(key)
    params = init_params(k_params, VARS_DIM, HIDDEN_DIM, INPUT_LENGTH)
    packed = pack_params(params, VARS_DIM, HIDDEN_DIM, INPUT_LENGTH)  # once

    # x: (seq_len=input_length, batch=1, vars_dim) — seq-first like nn.LSTM
    x = jax.random.normal(k_x, (INPUT_LENGTH, 1, VARS_DIM), jnp.float32)

    out = lstm_autoencoder_forward(packed, x)
    out = jax.block_until_ready(out)

    ref = reference_forward(params, x, HIDDEN_DIM)
    np.testing.assert_allclose(np.asarray(out), ref, rtol=2e-3, atol=2e-3)
    print("KERNEL_OK")
</pallas_src>

<mosaic_0001>
module attributes {stable_mosaic.version = 11 : i64} {
  func.func @lstm_ae_kernel(%arg0: i32, %arg1: memref<8x8xf32, #tpu.memory_space<vmem>>, %arg2: memref<8x128xf32, #tpu.memory_space<vmem>>, %arg3: memref<128x128xf32, #tpu.memory_space<vmem>>, %arg4: memref<1x128xf32, #tpu.memory_space<vmem>>, %arg5: memref<256x128xf32, #tpu.memory_space<vmem>>, %arg6: memref<1x128xf32, #tpu.memory_space<vmem>>, %arg7: memref<2x128x128xf32, #tpu.memory_space<any>>, %arg8: memref<1x128xf32, #tpu.memory_space<vmem>>, %arg9: memref<1x128xf32, #tpu.memory_space<vmem>>, %arg10: memref<2x128x128xf32, #tpu.memory_space<vmem>>, %arg11: memref<!tpu.dma_semaphore, #tpu.memory_space<semaphore_mem>>) attributes {dimension_semantics = [#tpu.dimension_semantics<arbitrary>], iteration_bounds = array<i64: 1>, scalar_prefetch = 0 : i64, scratch_operands = 2 : i64, tpu.core_type = #tpu.core_type<tc>, window_params = [{pipeline_mode = #tpu.pipeline_mode<synchronous>, transform_indices = @transform_0, window_bounds = array<i64: 8, 8>}, {pipeline_mode = #tpu.pipeline_mode<synchronous>, transform_indices = @transform_1, window_bounds = array<i64: 8, 128>}, {pipeline_mode = #tpu.pipeline_mode<synchronous>, transform_indices = @transform_2, window_bounds = array<i64: 128, 128>}, {pipeline_mode = #tpu.pipeline_mode<synchronous>, transform_indices = @transform_3, window_bounds = array<i64: 1, 128>}, {pipeline_mode = #tpu.pipeline_mode<synchronous>, transform_indices = @transform_4, window_bounds = array<i64: 256, 128>}, {pipeline_mode = #tpu.pipeline_mode<synchronous>, transform_indices = @transform_5, window_bounds = array<i64: 1, 128>}, {}, {pipeline_mode = #tpu.pipeline_mode<synchronous>, transform_indices = @transform_7, window_bounds = array<i64: 1, 128>}, {pipeline_mode = #tpu.pipeline_mode<synchronous>, transform_indices = @transform_8, window_bounds = array<i64: 1, 128>}]} {
    tpu.enqueue_dma source(%arg7 : memref<2x128x128xf32, #tpu.memory_space<any>>) target(%arg10 : memref<2x128x128xf32, #tpu.memory_space<vmem>>) target_semaphore(%arg11 : memref<!tpu.dma_semaphore, #tpu.memory_space<semaphore_mem>>)
    %c0 = arith.constant 0 : index
    %c0_0 = arith.constant 0 : index
    %0 = vector.load %arg1[%c0, %c0_0] : memref<8x8xf32, #tpu.memory_space<vmem>>, vector<8x8xf32>
    %c0_1 = arith.constant 0 : index
    %c0_2 = arith.constant 0 : index
    %1 = vector.load %arg2[%c0_1, %c0_2] : memref<8x128xf32, #tpu.memory_space<vmem>>, vector<8x128xf32>
    %cst = arith.constant dense<0.000000e+00> : vector<8x128xf32>
    %2 = tpu.matmul %0, %1, %cst {dimension_numbers = #tpu.dot_dimension_numbers<[1], [0], [0], [1], [0, 0, 1, 1], [], []>} : vector<8x8xf32>, vector<8x128xf32>, vector<8x128xf32> -> vector<8x128xf32>
    %c0_3 = arith.constant 0 : index
    %c0_4 = arith.constant 0 : index
    %3 = vector.load %arg4[%c0_3, %c0_4] : memref<1x128xf32, #tpu.memory_space<vmem>>, vector<1x128xf32>
    %4 = vector.broadcast %3 : vector<1x128xf32> to vector<8x128xf32>
    %5 = arith.addf %2, %4 : vector<8x128xf32>
    %6 = tpu.iota {dimensions = array<i32: 1>} : vector<1x128xi32>
    %c96_i32 = arith.constant 96 : i32
    %7 = vector.broadcast %c96_i32 : i32 to vector<1x128xi32>
    %8 = arith.cmpi slt, %6, %7 : vector<1x128xi32>
    %cst_5 = arith.constant 5.000000e-01 : f32
    %cst_6 = arith.constant 1.000000e+00 : f32
    %9 = vector.broadcast %cst_5 : f32 to vector<1x128xf32>
    %10 = vector.broadcast %cst_6 : f32 to vector<1x128xf32>
    %11 = arith.select %8, %9, %10 : vector<1x128xi1>, vector<1x128xf32>
    %c96_i32_7 = arith.constant 96 : i32
    %12 = vector.broadcast %c96_i32_7 : i32 to vector<1x128xi32>
    %13 = arith.cmpi slt, %6, %12 : vector<1x128xi32>
    %cst_8 = arith.constant 5.000000e-01 : f32
    %cst_9 = arith.constant 0.000000e+00 : f32
    %14 = vector.broadcast %cst_8 : f32 to vector<1x128xf32>
    %15 = vector.broadcast %cst_9 : f32 to vector<1x128xf32>
    %16 = arith.select %13, %14, %15 : vector<1x128xi1>, vector<1x128xf32>
    %cst_10 = arith.constant 0.000000e+00 : f32
    %17 = vector.broadcast %cst_10 : f32 to vector<1x128xf32>
    %c0_11 = arith.constant 0 : index
    %c0_12 = arith.constant 0 : index
    %18 = vector.load %arg6[%c0_11, %c0_12] : memref<1x128xf32, #tpu.memory_space<vmem>>, vector<1x128xf32>
    %19 = vector.extract_strided_slice %5 {offsets = [0, 0], sizes = [1, 128], strides = [1, 1]} : vector<8x128xf32> to vector<1x128xf32>
    %c0_13 = arith.constant 0 : index
    %c0_14 = arith.constant 0 : index
    %20 = vector.load %arg3[%c0_13, %c0_14] : memref<128x128xf32, #tpu.memory_space<vmem>>, vector<128x128xf32>
    %cst_15 = arith.constant dense<0.000000e+00> : vector<1x128xf32>
    %21 = tpu.matmul %17, %20, %cst_15 {dimension_numbers = #tpu.dot_dimension_numbers<[1], [0], [0], [1], [0, 0, 1, 1], [], []>} : vector<1x128xf32>, vector<128x128xf32>, vector<1x128xf32> -> vector<1x128xf32>
    %22 = arith.addf %19, %21 : vector<1x128xf32>
    %23 = arith.mulf %11, %22 : vector<1x128xf32>
    %24 = math.tanh %23 : vector<1x128xf32>
    %25 = arith.mulf %11, %24 : vector<1x128xf32>
    %26 = arith.addf %25, %16 : vector<1x128xf32>
    %c96_i32_16 = arith.constant 96 : i32
    %27 = tpu.dynamic_rotate %26 by %c96_i32_16 dim 1 : vector<1x128xf32>, i32 -> vector<1x128xf32>
    %c64_i32 = arith.constant 64 : i32
    %28 = tpu.dynamic_rotate %26 by %c64_i32 dim 1 : vector<1x128xf32>, i32 -> vector<1x128xf32>
    %c32_i32 = arith.constant 32 : i32
    %29 = tpu.dynamic_rotate %26 by %c32_i32 dim 1 : vector<1x128xf32>, i32 -> vector<1x128xf32>
    %30 = arith.mulf %27, %17 : vector<1x128xf32>
    %31 = arith.mulf %26, %29 : vector<1x128xf32>
    %32 = arith.addf %30, %31 : vector<1x128xf32>
    %33 = math.tanh %32 : vector<1x128xf32>
    %34 = arith.mulf %28, %33 : vector<1x128xf32>
    %35 = tpu.concatenate %34, %17 in 1 : vector<1x128xf32>, vector<1x128xf32> -> vector<1x256xf32>
    %c0_17 = arith.constant 0 : index
    %c0_18 = arith.constant 0 : index
    %36 = vector.load %arg5[%c0_17, %c0_18] : memref<256x128xf32, #tpu.memory_space<vmem>>, vector<256x128xf32>
    %cst_19 = arith.constant dense<0.000000e+00> : vector<1x128xf32>
    %37 = tpu.matmul %35, %36, %cst_19 {dimension_numbers = #tpu.dot_dimension_numbers<[1], [0], [0], [1], [0, 0, 1, 1], [], []>} : vector<1x256xf32>, vector<256x128xf32>, vector<1x128xf32> -> vector<1x128xf32>
    %38 = arith.addf %18, %37 : vector<1x128xf32>
    %39 = arith.mulf %11, %38 : vector<1x128xf32>
    %40 = math.tanh %39 : vector<1x128xf32>
    %41 = arith.mulf %11, %40 : vector<1x128xf32>
    %42 = arith.addf %41, %16 : vector<1x128xf32>
    %c96_i32_20 = arith.constant 96 : i32
    %43 = tpu.dynamic_rotate %42 by %c96_i32_20 dim 1 : vector<1x128xf32>, i32 -> vector<1x128xf32>
    %c64_i32_21 = arith.constant 64 : i32
    %44 = tpu.dynamic_rotate %42 by %c64_i32_21 dim 1 : vector<1x128xf32>, i32 -> vector<1x128xf32>
    %c32_i32_22 = arith.constant 32 : i32
    %45 = tpu.dynamic_rotate %42 by %c32_i32_22 dim 1 : vector<1x128xf32>, i32 -> vector<1x128xf32>
    %46 = arith.mulf %43, %17 : vector<1x128xf32>
    %47 = arith.mulf %42, %45 : vector<1x128xf32>
    %48 = arith.addf %46, %47 : vector<1x128xf32>
    %49 = math.tanh %48 : vector<1x128xf32>
    %50 = arith.mulf %44, %49 : vector<1x128xf32>
    %51 = vector.extract_strided_slice %5 {offsets = [1, 0], sizes = [1, 128], strides = [1, 1]} : vector<8x128xf32> to vector<1x128xf32>
    %c0_23 = arith.constant 0 : index
    %c0_24 = arith.constant 0 : index
    %52 = vector.load %arg3[%c0_23, %c0_24] : memref<128x128xf32, #tpu.memory_space<vmem>>, vector<128x128xf32>
    %cst_25 = arith.constant dense<0.000000e+00> : vector<1x128xf32>
    %53 = tpu.matmul %34, %52, %cst_25 {dimension_numbers = #tpu.dot_dimension_numbers<[1], [0], [0], [1], [0, 0, 1, 1], [], []>} : vector<1x128xf32>, vector<128x128xf32>, vector<1x128xf32> -> vector<1x128xf32>
    %54 = arith.addf %51, %53 : vector<1x128xf32>
    %55 = arith.mulf %11, %54 : vector<1x128xf32>
    %56 = math.tanh %55 : vector<1x128xf32>
    %57 = arith.mulf %11, %56 : vector<1x128xf32>
    %58 = arith.addf %57, %16 : vector<1x128xf32>
    %c96_i32_26 = arith.constant 96 : i32
    %59 = tpu.dynamic_rotate %58 by %c96_i32_26 dim 1 : vector<1x128xf32>, i32 -> vector<1x128xf32>
    %c64_i32_27 = arith.constant 64 : i32
    %60 = tpu.dynamic_rotate %58 by %c64_i32_27 dim 1 : vector<1x128xf32>, i32 -> vector<1x128xf32>
    %c32_i32_28 = arith.constant 32 : i32
    %61 = tpu.dynamic_rotate %58 by %c32_i32_28 dim 1 : vector<1x128xf32>, i32 -> vector<1x128xf32>
    %62 = arith.mulf %59, %32 : vector<1x128xf32>
    %63 = arith.mulf %58, %61 : vector<1x128xf32>
    %64 = arith.addf %62, %63 : vector<1x128xf32>
    %65 = math.tanh %64 : vector<1x128xf32>
    %66 = arith.mulf %60, %65 : vector<1x128xf32>
    %67 = tpu.concatenate %66, %50 in 1 : vector<1x128xf32>, vector<1x128xf32> -> vector<1x256xf32>
    %c0_29 = arith.constant 0 : index
    %c0_30 = arith.constant 0 : index
    %68 = vector.load %arg5[%c0_29, %c0_30] : memref<256x128xf32, #tpu.memory_space<vmem>>, vector<256x128xf32>
    %cst_31 = arith.constant dense<0.000000e+00> : vector<1x128xf32>
    %69 = tpu.matmul %67, %68, %cst_31 {dimension_numbers = #tpu.dot_dimension_numbers<[1], [0], [0], [1], [0, 0, 1, 1], [], []>} : vector<1x256xf32>, vector<256x128xf32>, vector<1x128xf32> -> vector<1x128xf32>
    %70 = arith.addf %18, %69 : vector<1x128xf32>
    %71 = arith.mulf %11, %70 : vector<1x128xf32>
    %72 = math.tanh %71 : vector<1x128xf32>
    %73 = arith.mulf %11, %72 : vector<1x128xf32>
    %74 = arith.addf %73, %16 : vector<1x128xf32>
    %c96_i32_32 = arith.constant 96 : i32
    %75 = tpu.dynamic_rotate %74 by %c96_i32_32 dim 1 : vector<1x128xf32>, i32 -> vector<1x128xf32>
    %c64_i32_33 = arith.constant 64 : i32
    %76 = tpu.dynamic_rotate %74 by %c64_i32_33 dim 1 : vector<1x128xf32>, i32 -> vector<1x128xf32>
    %c32_i32_34 = arith.constant 32 : i32
    %77 = tpu.dynamic_rotate %74 by %c32_i32_34 dim 1 : vector<1x128xf32>, i32 -> vector<1x128xf32>
    %78 = arith.mulf %75, %48 : vector<1x128xf32>
    %79 = arith.mulf %74, %77 : vector<1x128xf32>
    %80 = arith.addf %78, %79 : vector<1x128xf32>
    %81 = math.tanh %80 : vector<1x128xf32>
    %82 = arith.mulf %76, %81 : vector<1x128xf32>
    %83 = vector.extract_strided_slice %5 {offsets = [2, 0], sizes = [1, 128], strides = [1, 1]} : vector<8x128xf32> to vector<1x128xf32>
    %c0_35 = arith.constant 0 : index
    %c0_36 = arith.constant 0 : index
    %84 = vector.load %arg3[%c0_35, %c0_36] : memref<128x128xf32, #tpu.memory_space<vmem>>, vector<128x128xf32>
    %cst_37 = arith.constant dense<0.000000e+00> : vector<1x128xf32>
    %85 = tpu.matmul %66, %84, %cst_37 {dimension_numbers = #tpu.dot_dimension_numbers<[1], [0], [0], [1], [0, 0, 1, 1], [], []>} : vector<1x128xf32>, vector<128x128xf32>, vector<1x128xf32> -> vector<1x128xf32>
    %86 = arith.addf %83, %85 : vector<1x128xf32>
    %87 = arith.mulf %11, %86 : vector<1x128xf32>
    %88 = math.tanh %87 : vector<1x128xf32>
    %89 = arith.mulf %11, %88 : vector<1x128xf32>
    %90 = arith.addf %89, %16 : vector<1x128xf32>
    %c96_i32_38 = arith.constant 96 : i32
    %91 = tpu.dynamic_rotate %90 by %c96_i32_38 dim 1 : vector<1x128xf32>, i32 -> vector<1x128xf32>
    %c64_i32_39 = arith.constant 64 : i32
    %92 = tpu.dynamic_rotate %90 by %c64_i32_39 dim 1 : vector<1x128xf32>, i32 -> vector<1x128xf32>
    %c32_i32_40 = arith.constant 32 : i32
    %93 = tpu.dynamic_rotate %90 by %c32_i32_40 dim 1 : vector<1x128xf32>, i32 -> vector<1x128xf32>
    %94 = arith.mulf %91, %64 : vector<1x128xf32>
    %95 = arith.mulf %90, %93 : vector<1x128xf32>
    %96 = arith.addf %94, %95 : vector<1x128xf32>
    %97 = math.tanh %96 : vector<1x128xf32>
    %98 = arith.mulf %92, %97 : vector<1x128xf32>
    %99 = tpu.concatenate %98, %82 in 1 : vector<1x128xf32>, vector<1x128xf32> -> vector<1x256xf32>
    %c0_41 = arith.constant 0 : index
    %c0_42 = arith.constant 0 : index
    %100 = vector.load %arg5[%c0_41, %c0_42] : memref<256x128xf32, #tpu.memory_space<vmem>>, vector<256x128xf32>
    %cst_43 = arith.constant dense<0.000000e+00> : vector<1x128xf32>
    %101 = tpu.matmul %99, %100, %cst_43 {dimension_numbers = #tpu.dot_dimension_numbers<[1], [0], [0], [1], [0, 0, 1, 1], [], []>} : vector<1x256xf32>, vector<256x128xf32>, vector<1x128xf32> -> vector<1x128xf32>
    %102 = arith.addf %18, %101 : vector<1x128xf32>
    %103 = arith.mulf %11, %102 : vector<1x128xf32>
    %104 = math.tanh %103 : vector<1x128xf32>
    %105 = arith.mulf %11, %104 : vector<1x128xf32>
    %106 = arith.addf %105, %16 : vector<1x128xf32>
    %c96_i32_44 = arith.constant 96 : i32
    %107 = tpu.dynamic_rotate %106 by %c96_i32_44 dim 1 : vector<1x128xf32>, i32 -> vector<1x128xf32>
    %c64_i32_45 = arith.constant 64 : i32
    %108 = tpu.dynamic_rotate %106 by %c64_i32_45 dim 1 : vector<1x128xf32>, i32 -> vector<1x128xf32>
    %c32_i32_46 = arith.constant 32 : i32
    %109 = tpu.dynamic_rotate %106 by %c32_i32_46 dim 1 : vector<1x128xf32>, i32 -> vector<1x128xf32>
    %110 = arith.mulf %107, %80 : vector<1x128xf32>
    %111 = arith.mulf %106, %109 : vector<1x128xf32>
    %112 = arith.addf %110, %111 : vector<1x128xf32>
    %113 = math.tanh %112 : vector<1x128xf32>
    %114 = arith.mulf %108, %113 : vector<1x128xf32>
    %115 = vector.extract_strided_slice %5 {offsets = [3, 0], sizes = [1, 128], strides = [1, 1]} : vector<8x128xf32> to vector<1x128xf32>
    %c0_47 = arith.constant 0 : index
    %c0_48 = arith.constant 0 : index
    %116 = vector.load %arg3[%c0_47, %c0_48] : memref<128x128xf32, #tpu.memory_space<vmem>>, vector<128x128xf32>
    %cst_49 = arith.constant dense<0.000000e+00> : vector<1x128xf32>
    %117 = tpu.matmul %98, %116, %cst_49 {dimension_numbers = #tpu.dot_dimension_numbers<[1], [0], [0], [1], [0, 0, 1, 1], [], []>} : vector<1x128xf32>, vector<128x128xf32>, vector<1x128xf32> -> vector<1x128xf32>
    %118 = arith.addf %115, %117 : vector<1x128xf32>
    %119 = arith.mulf %11, %118 : vector<1x128xf32>
    %120 = math.tanh %119 : vector<1x128xf32>
    %121 = arith.mulf %11, %120 : vector<1x128xf32>
    %122 = arith.addf %121, %16 : vector<1x128xf32>
    %c96_i32_50 = arith.constant 96 : i32
    %123 = tpu.dynamic_rotate %122 by %c96_i32_50 dim 1 : vector<1x128xf32>, i32 -> vector<1x128xf32>
    %c64_i32_51 = arith.constant 64 : i32
    %124 = tpu.dynamic_rotate %122 by %c64_i32_51 dim 1 : vector<1x128xf32>, i32 -> vector<1x128xf32>
    %c32_i32_52 = arith.constant 32 : i32
    %125 = tpu.dynamic_rotate %122 by %c32_i32_52 dim 1 : vector<1x128xf32>, i32 -> vector<1x128xf32>
    %126 = arith.mulf %123, %96 : vector<1x128xf32>
    %127 = arith.mulf %122, %125 : vector<1x128xf32>
    %128 = arith.addf %126, %127 : vector<1x128xf32>
    %129 = math.tanh %128 : vector<1x128xf32>
    %130 = arith.mulf %124, %129 : vector<1x128xf32>
    %131 = tpu.concatenate %130, %114 in 1 : vector<1x128xf32>, vector<1x128xf32> -> vector<1x256xf32>
    %c0_53 = arith.constant 0 : index
    %c0_54 = arith.constant 0 : index
    %132 = vector.load %arg5[%c0_53, %c0_54] : memref<256x128xf32, #tpu.memory_space<vmem>>, vector<256x128xf32>
    %cst_55 = arith.constant dense<0.000000e+00> : vector<1x128xf32>
    %133 = tpu.matmul %131, %132, %cst_55 {dimension_numbers = #tpu.dot_dimension_numbers<[1], [0], [0], [1], [0, 0, 1, 1], [], []>} : vector<1x256xf32>, vector<256x128xf32>, vector<1x128xf32> -> vector<1x128xf32>
    %134 = arith.addf %18, %133 : vector<1x128xf32>
    %135 = arith.mulf %11, %134 : vector<1x128xf32>
    %136 = math.tanh %135 : vector<1x128xf32>
    %137 = arith.mulf %11, %136 : vector<1x128xf32>
    %138 = arith.addf %137, %16 : vector<1x128xf32>
    %c96_i32_56 = arith.constant 96 : i32
    %139 = tpu.dynamic_rotate %138 by %c96_i32_56 dim 1 : vector<1x128xf32>, i32 -> vector<1x128xf32>
    %c64_i32_57 = arith.constant 64 : i32
    %140 = tpu.dynamic_rotate %138 by %c64_i32_57 dim 1 : vector<1x128xf32>, i32 -> vector<1x128xf32>
    %c32_i32_58 = arith.constant 32 : i32
    %141 = tpu.dynamic_rotate %138 by %c32_i32_58 dim 1 : vector<1x128xf32>, i32 -> vector<1x128xf32>
    %142 = arith.mulf %139, %112 : vector<1x128xf32>
    %143 = arith.mulf %138, %141 : vector<1x128xf32>
    %144 = arith.addf %142, %143 : vector<1x128xf32>
    %145 = math.tanh %144 : vector<1x128xf32>
    %146 = arith.mulf %140, %145 : vector<1x128xf32>
    %147 = vector.extract_strided_slice %5 {offsets = [4, 0], sizes = [1, 128], strides = [1, 1]} : vector<8x128xf32> to vector<1x128xf32>
    %c0_59 = arith.constant 0 : index
    %c0_60 = arith.constant 0 : index
    %148 = vector.load %arg3[%c0_59, %c0_60] : memref<128x128xf32, #tpu.memory_space<vmem>>, vector<128x128xf32>
    %cst_61 = arith.constant dense<0.000000e+00> : vector<1x128xf32>
    %149 = tpu.matmul %130, %148, %cst_61 {dimension_numbers = #tpu.dot_dimension_numbers<[1], [0], [0], [1], [0, 0, 1, 1], [], []>} : vector<1x128xf32>, vector<128x128xf32>, vector<1x128xf32> -> vector<1x128xf32>
    %150 = arith.addf %147, %149 : vector<1x128xf32>
    %151 = arith.mulf %11, %150 : vector<1x128xf32>
    %152 = math.tanh %151 : vector<1x128xf32>
    %153 = arith.mulf %11, %152 : vector<1x128xf32>
    %154 = arith.addf %153, %16 : vector<1x128xf32>
    %c96_i32_62 = arith.constant 96 : i32
    %155 = tpu.dynamic_rotate %154 by %c96_i32_62 dim 1 : vector<1x128xf32>, i32 -> vector<1x128xf32>
    %c64_i32_63 = arith.constant 64 : i32
    %156 = tpu.dynamic_rotate %154 by %c64_i32_63 dim 1 : vector<1x128xf32>, i32 -> vector<1x128xf32>
    %c32_i32_64 = arith.constant 32 : i32
    %157 = tpu.dynamic_rotate %154 by %c32_i32_64 dim 1 : vector<1x128xf32>, i32 -> vector<1x128xf32>
    %158 = arith.mulf %155, %128 : vector<1x128xf32>
    %159 = arith.mulf %154, %157 : vector<1x128xf32>
    %160 = arith.addf %158, %159 : vector<1x128xf32>
    %161 = math.tanh %160 : vector<1x128xf32>
    %162 = arith.mulf %156, %161 : vector<1x128xf32>
    %163 = tpu.concatenate %162, %146 in 1 : vector<1x128xf32>, vector<1x128xf32> -> vector<1x256xf32>
    %c0_65 = arith.constant 0 : index
    %c0_66 = arith.constant 0 : index
    %164 = vector.load %arg5[%c0_65, %c0_66] : memref<256x128xf32, #tpu.memory_space<vmem>>, vector<256x128xf32>
    %cst_67 = arith.constant dense<0.000000e+00> : vector<1x128xf32>
    %165 = tpu.matmul %163, %164, %cst_67 {dimension_numbers = #tpu.dot_dimension_numbers<[1], [0], [0], [1], [0, 0, 1, 1], [], []>} : vector<1x256xf32>, vector<256x128xf32>, vector<1x128xf32> -> vector<1x128xf32>
    %166 = arith.addf %18, %165 : vector<1x128xf32>
    %167 = arith.mulf %11, %166 : vector<1x128xf32>
    %168 = math.tanh %167 : vector<1x128xf32>
    %169 = arith.mulf %11, %168 : vector<1x128xf32>
    %170 = arith.addf %169, %16 : vector<1x128xf32>
    %c96_i32_68 = arith.constant 96 : i32
    %171 = tpu.dynamic_rotate %170 by %c96_i32_68 dim 1 : vector<1x128xf32>, i32 -> vector<1x128xf32>
    %c64_i32_69 = arith.constant 64 : i32
    %172 = tpu.dynamic_rotate %170 by %c64_i32_69 dim 1 : vector<1x128xf32>, i32 -> vector<1x128xf32>
    %c32_i32_70 = arith.constant 32 : i32
    %173 = tpu.dynamic_rotate %170 by %c32_i32_70 dim 1 : vector<1x128xf32>, i32 -> vector<1x128xf32>
    %174 = arith.mulf %171, %144 : vector<1x128xf32>
    %175 = arith.mulf %170, %173 : vector<1x128xf32>
    %176 = arith.addf %174, %175 : vector<1x128xf32>
    %177 = math.tanh %176 : vector<1x128xf32>
    %178 = arith.mulf %172, %177 : vector<1x128xf32>
    %179 = vector.extract_strided_slice %5 {offsets = [5, 0], sizes = [1, 128], strides = [1, 1]} : vector<8x128xf32> to vector<1x128xf32>
    %c0_71 = arith.constant 0 : index
    %c0_72 = arith.constant 0 : index
    %180 = vector.load %arg3[%c0_71, %c0_72] : memref<128x128xf32, #tpu.memory_space<vmem>>, vector<128x128xf32>
    %cst_73 = arith.constant dense<0.000000e+00> : vector<1x128xf32>
    %181 = tpu.matmul %162, %180, %cst_73 {dimension_numbers = #tpu.dot_dimension_numbers<[1], [0], [0], [1], [0, 0, 1, 1], [], []>} : vector<1x128xf32>, vector<128x128xf32>, vector<1x128xf32> -> vector<1x128xf32>
    %182 = arith.addf %179, %181 : vector<1x128xf32>
    %183 = arith.mulf %11, %182 : vector<1x128xf32>
    %184 = math.tanh %183 : vector<1x128xf32>
    %185 = arith.mulf %11, %184 : vector<1x128xf32>
    %186 = arith.addf %185, %16 : vector<1x128xf32>
    %c96_i32_74 = arith.constant 96 : i32
    %187 = tpu.dynamic_rotate %186 by %c96_i32_74 dim 1 : vector<1x128xf32>, i32 -> vector<1x128xf32>
    %c64_i32_75 = arith.constant 64 : i32
    %188 = tpu.dynamic_rotate %186 by %c64_i32_75 dim 1 : vector<1x128xf32>, i32 -> vector<1x128xf32>
    %c32_i32_76 = arith.constant 32 : i32
    %189 = tpu.dynamic_rotate %186 by %c32_i32_76 dim 1 : vector<1x128xf32>, i32 -> vector<1x128xf32>
    %190 = arith.mulf %187, %160 : vector<1x128xf32>
    %191 = arith.mulf %186, %189 : vector<1x128xf32>
    %192 = arith.addf %190, %191 : vector<1x128xf32>
    %193 = math.tanh %192 : vector<1x128xf32>
    %194 = arith.mulf %188, %193 : vector<1x128xf32>
    %195 = tpu.concatenate %194, %178 in 1 : vector<1x128xf32>, vector<1x128xf32> -> vector<1x256xf32>
    %c0_77 = arith.constant 0 : index
    %c0_78 = arith.constant 0 : index
    %196 = vector.load %arg5[%c0_77, %c0_78] : memref<256x128xf32, #tpu.memory_space<vmem>>, vector<256x128xf32>
    %cst_79 = arith.constant dense<0.000000e+00> : vector<1x128xf32>
    %197 = tpu.matmul %195, %196, %cst_79 {dimension_numbers = #tpu.dot_dimension_numbers<[1], [0], [0], [1], [0, 0, 1, 1], [], []>} : vector<1x256xf32>, vector<256x128xf32>, vector<1x128xf32> -> vector<1x128xf32>
    %198 = arith.addf %18, %197 : vector<1x128xf32>
    %199 = arith.mulf %11, %198 : vector<1x128xf32>
    %200 = math.tanh %199 : vector<1x128xf32>
    %201 = arith.mulf %11, %200 : vector<1x128xf32>
    %202 = arith.addf %201, %16 : vector<1x128xf32>
    %c96_i32_80 = arith.constant 96 : i32
    %203 = tpu.dynamic_rotate %202 by %c96_i32_80 dim 1 : vector<1x128xf32>, i32 -> vector<1x128xf32>
    %c64_i32_81 = arith.constant 64 : i32
    %204 = tpu.dynamic_rotate %202 by %c64_i32_81 dim 1 : vector<1x128xf32>, i32 -> vector<1x128xf32>
    %c32_i32_82 = arith.constant 32 : i32
    %205 = tpu.dynamic_rotate %202 by %c32_i32_82 dim 1 : vector<1x128xf32>, i32 -> vector<1x128xf32>
    %206 = arith.mulf %203, %176 : vector<1x128xf32>
    %207 = arith.mulf %202, %205 : vector<1x128xf32>
    %208 = arith.addf %206, %207 : vector<1x128xf32>
    %209 = math.tanh %208 : vector<1x128xf32>
    %210 = arith.mulf %204, %209 : vector<1x128xf32>
    %211 = vector.extract_strided_slice %5 {offsets = [6, 0], sizes = [1, 128], strides = [1, 1]} : vector<8x128xf32> to vector<1x128xf32>
    %c0_83 = arith.constant 0 : index
    %c0_84 = arith.constant 0 : index
    %212 = vector.load %arg3[%c0_83, %c0_84] : memref<128x128xf32, #tpu.memory_space<vmem>>, vector<128x128xf32>
    %cst_85 = arith.constant dense<0.000000e+00> : vector<1x128xf32>
    %213 = tpu.matmul %194, %212, %cst_85 {dimension_numbers = #tpu.dot_dimension_numbers<[1], [0], [0], [1], [0, 0, 1, 1], [], []>} : vector<1x128xf32>, vector<128x128xf32>, vector<1x128xf32> -> vector<1x128xf32>
    %214 = arith.addf %211, %213 : vector<1x128xf32>
    %215 = arith.mulf %11, %214 : vector<1x128xf32>
    %216 = math.tanh %215 : vector<1x128xf32>
    %217 = arith.mulf %11, %216 : vector<1x128xf32>
    %218 = arith.addf %217, %16 : vector<1x128xf32>
    %c96_i32_86 = arith.constant 96 : i32
    %219 = tpu.dynamic_rotate %218 by %c96_i32_86 dim 1 : vector<1x128xf32>, i32 -> vector<1x128xf32>
    %c64_i32_87 = arith.constant 64 : i32
    %220 = tpu.dynamic_rotate %218 by %c64_i32_87 dim 1 : vector<1x128xf32>, i32 -> vector<1x128xf32>
    %c32_i32_88 = arith.constant 32 : i32
    %221 = tpu.dynamic_rotate %218 by %c32_i32_88 dim 1 : vector<1x128xf32>, i32 -> vector<1x128xf32>
    %222 = arith.mulf %219, %192 : vector<1x128xf32>
    %223 = arith.mulf %218, %221 : vector<1x128xf32>
    %224 = arith.addf %222, %223 : vector<1x128xf32>
    %225 = math.tanh %224 : vector<1x128xf32>
    %226 = arith.mulf %220, %225 : vector<1x128xf32>
    %227 = tpu.concatenate %226, %210 in 1 : vector<1x128xf32>, vector<1x128xf32> -> vector<1x256xf32>
    %c0_89 = arith.constant 0 : index
    %c0_90 = arith.constant 0 : index
    %228 = vector.load %arg5[%c0_89, %c0_90] : memref<256x128xf32, #tpu.memory_space<vmem>>, vector<256x128xf32>
    %cst_91 = arith.constant dense<0.000000e+00> : vector<1x128xf32>
    %229 = tpu.matmul %227, %228, %cst_91 {dimension_numbers = #tpu.dot_dimension_numbers<[1], [0], [0], [1], [0, 0, 1, 1], [], []>} : vector<1x256xf32>, vector<256x128xf32>, vector<1x128xf32> -> vector<1x128xf32>
    %230 = arith.addf %18, %229 : vector<1x128xf32>
    %231 = arith.mulf %11, %230 : vector<1x128xf32>
    %232 = math.tanh %231 : vector<1x128xf32>
    %233 = arith.mulf %11, %232 : vector<1x128xf32>
    %234 = arith.addf %233, %16 : vector<1x128xf32>
    %c96_i32_92 = arith.constant 96 : i32
    %235 = tpu.dynamic_rotate %234 by %c96_i32_92 dim 1 : vector<1x128xf32>, i32 -> vector<1x128xf32>
    %c64_i32_93 = arith.constant 64 : i32
    %236 = tpu.dynamic_rotate %234 by %c64_i32_93 dim 1 : vector<1x128xf32>, i32 -> vector<1x128xf32>
    %c32_i32_94 = arith.constant 32 : i32
    %237 = tpu.dynamic_rotate %234 by %c32_i32_94 dim 1 : vector<1x128xf32>, i32 -> vector<1x128xf32>
    %238 = arith.mulf %235, %208 : vector<1x128xf32>
    %239 = arith.mulf %234, %237 : vector<1x128xf32>
    %240 = arith.addf %238, %239 : vector<1x128xf32>
    %241 = math.tanh %240 : vector<1x128xf32>
    %242 = arith.mulf %236, %241 : vector<1x128xf32>
    %243 = vector.extract_strided_slice %5 {offsets = [7, 0], sizes = [1, 128], strides = [1, 1]} : vector<8x128xf32> to vector<1x128xf32>
    %c0_95 = arith.constant 0 : index
    %c0_96 = arith.constant 0 : index
    %244 = vector.load %arg3[%c0_95, %c0_96] : memref<128x128xf32, #tpu.memory_space<vmem>>, vector<128x128xf32>
    %cst_97 = arith.constant dense<0.000000e+00> : vector<1x128xf32>
    %245 = tpu.matmul %226, %244, %cst_97 {dimension_numbers = #tpu.dot_dimension_numbers<[1], [0], [0], [1], [0, 0, 1, 1], [], []>} : vector<1x128xf32>, vector<128x128xf32>, vector<1x128xf32> -> vector<1x128xf32>
    %246 = arith.addf %243, %245 : vector<1x128xf32>
    %247 = arith.mulf %11, %246 : vector<1x128xf32>
    %248 = math.tanh %247 : vector<1x128xf32>
    %249 = arith.mulf %11, %248 : vector<1x128xf32>
    %250 = arith.addf %249, %16 : vector<1x128xf32>
    %c96_i32_98 = arith.constant 96 : i32
    %251 = tpu.dynamic_rotate %250 by %c96_i32_98 dim 1 : vector<1x128xf32>, i32 -> vector<1x128xf32>
    %c64_i32_99 = arith.constant 64 : i32
    %252 = tpu.dynamic_rotate %250 by %c64_i32_99 dim 1 : vector<1x128xf32>, i32 -> vector<1x128xf32>
    %c32_i32_100 = arith.constant 32 : i32
    %253 = tpu.dynamic_rotate %250 by %c32_i32_100 dim 1 : vector<1x128xf32>, i32 -> vector<1x128xf32>
    %254 = arith.mulf %251, %224 : vector<1x128xf32>
    %255 = arith.mulf %250, %253 : vector<1x128xf32>
    %256 = arith.addf %254, %255 : vector<1x128xf32>
    %257 = math.tanh %256 : vector<1x128xf32>
    %258 = arith.mulf %252, %257 : vector<1x128xf32>
    %259 = tpu.concatenate %258, %242 in 1 : vector<1x128xf32>, vector<1x128xf32> -> vector<1x256xf32>
    %c0_101 = arith.constant 0 : index
    %c0_102 = arith.constant 0 : index
    %260 = vector.load %arg5[%c0_101, %c0_102] : memref<256x128xf32, #tpu.memory_space<vmem>>, vector<256x128xf32>
    %cst_103 = arith.constant dense<0.000000e+00> : vector<1x128xf32>
    %261 = tpu.matmul %259, %260, %cst_103 {dimension_numbers = #tpu.dot_dimension_numbers<[1], [0], [0], [1], [0, 0, 1, 1], [], []>} : vector<1x256xf32>, vector<256x128xf32>, vector<1x128xf32> -> vector<1x128xf32>
    %262 = arith.addf %18, %261 : vector<1x128xf32>
    %263 = arith.mulf %11, %262 : vector<1x128xf32>
    %264 = math.tanh %263 : vector<1x128xf32>
    %265 = arith.mulf %11, %264 : vector<1x128xf32>
    %266 = arith.addf %265, %16 : vector<1x128xf32>
    %c96_i32_104 = arith.constant 96 : i32
    %267 = tpu.dynamic_rotate %266 by %c96_i32_104 dim 1 : vector<1x128xf32>, i32 -> vector<1x128xf32>
    %c64_i32_105 = arith.constant 64 : i32
    %268 = tpu.dynamic_rotate %266 by %c64_i32_105 dim 1 : vector<1x128xf32>, i32 -> vector<1x128xf32>
    %c32_i32_106 = arith.constant 32 : i32
    %269 = tpu.dynamic_rotate %266 by %c32_i32_106 dim 1 : vector<1x128xf32>, i32 -> vector<1x128xf32>
    %270 = arith.mulf %267, %240 : vector<1x128xf32>
    %271 = arith.mulf %266, %269 : vector<1x128xf32>
    %272 = arith.addf %270, %271 : vector<1x128xf32>
    %273 = math.tanh %272 : vector<1x128xf32>
    %274 = arith.mulf %268, %273 : vector<1x128xf32>
    tpu.wait_dma2 semaphore(%arg11 : memref<!tpu.dma_semaphore, #tpu.memory_space<semaphore_mem>>) src(%arg7 : memref<2x128x128xf32, #tpu.memory_space<any>>) dst(%arg10 : memref<2x128x128xf32, #tpu.memory_space<vmem>>)
    %c0_107 = arith.constant 0 : index
    %c0_108 = arith.constant 0 : index
    %275 = vector.load %arg8[%c0_107, %c0_108] : memref<1x128xf32, #tpu.memory_space<vmem>>, vector<1x128xf32>
    %cst_109 = arith.constant 0.000000e+00 : f32
    %276 = vector.broadcast %cst_109 : f32 to vector<1x128xf32>
    %c0_i32 = arith.constant 0 : i32
    %277 = vector.broadcast %c0_i32 : i32 to vector<1x128xi32>
    %278 = arith.cmpi sge, %6, %277 : vector<1x128xi32>
    %c32_i32_110 = arith.constant 32 : i32
    %279 = vector.broadcast %c32_i32_110 : i32 to vector<1x128xi32>
    %280 = arith.cmpi slt, %6, %279 : vector<1x128xi32>
    %281 = arith.andi %278, %280 : vector<1x128xi1>
    %282 = arith.select %281, %50, %276 : vector<1x128xi1>, vector<1x128xf32>
    %c32_i32_111 = arith.constant 32 : i32
    %283 = tpu.dynamic_rotate %82 by %c32_i32_111 dim 1 : vector<1x128xf32>, i32 -> vector<1x128xf32>
    %c32_i32_112 = arith.constant 32 : i32
    %284 = vector.broadcast %c32_i32_112 : i32 to vector<1x128xi32>
    %285 = arith.cmpi sge, %6, %284 : vector<1x128xi32>
    %c64_i32_113 = arith.constant 64 : i32
    %286 = vector.broadcast %c64_i32_113 : i32 to vector<1x128xi32>
    %287 = arith.cmpi slt, %6, %286 : vector<1x128xi32>
    %288 = arith.andi %285, %287 : vector<1x128xi1>
    %289 = arith.select %288, %283, %282 : vector<1x128xi1>, vector<1x128xf32>
    %c64_i32_114 = arith.constant 64 : i32
    %290 = tpu.dynamic_rotate %114 by %c64_i32_114 dim 1 : vector<1x128xf32>, i32 -> vector<1x128xf32>
    %c64_i32_115 = arith.constant 64 : i32
    %291 = vector.broadcast %c64_i32_115 : i32 to vector<1x128xi32>
    %292 = arith.cmpi sge, %6, %291 : vector<1x128xi32>
    %c96_i32_116 = arith.constant 96 : i32
    %293 = vector.broadcast %c96_i32_116 : i32 to vector<1x128xi32>
    %294 = arith.cmpi slt, %6, %293 : vector<1x128xi32>
    %295 = arith.andi %292, %294 : vector<1x128xi1>
    %296 = arith.select %295, %290, %289 : vector<1x128xi1>, vector<1x128xf32>
    %c96_i32_117 = arith.constant 96 : i32
    %297 = tpu.dynamic_rotate %146 by %c96_i32_117 dim 1 : vector<1x128xf32>, i32 -> vector<1x128xf32>
    %c96_i32_118 = arith.constant 96 : i32
    %298 = vector.broadcast %c96_i32_118 : i32 to vector<1x128xi32>
    %299 = arith.cmpi sge, %6, %298 : vector<1x128xi32>
    %c128_i32 = arith.constant 128 : i32
    %300 = vector.broadcast %c128_i32 : i32 to vector<1x128xi32>
    %301 = arith.cmpi slt, %6, %300 : vector<1x128xi32>
    %302 = arith.andi %299, %301 : vector<1x128xi1>
    %303 = arith.select %302, %297, %296 : vector<1x128xi1>, vector<1x128xf32>
    %c0_119 = arith.constant 0 : index
    %c0_120 = arith.constant 0 : index
    %c0_121 = arith.constant 0 : index
    %304 = vector.load %arg10[%c0_119, %c0_120, %c0_121] : memref<2x128x128xf32, #tpu.memory_space<vmem>>, vector<1x128x128xf32>
    %305 = vector.shape_cast %304 : vector<1x128x128xf32> to vector<128x128xf32>
    %cst_122 = arith.constant dense<0.000000e+00> : vector<1x128xf32>
    %306 = tpu.matmul %303, %305, %cst_122 {dimension_numbers = #tpu.dot_dimension_numbers<[1], [0], [0], [1], [0, 0, 1, 1], [], []>} : vector<1x128xf32>, vector<128x128xf32>, vector<1x128xf32> -> vector<1x128xf32>
    %307 = arith.addf %275, %306 : vector<1x128xf32>
    %cst_123 = arith.constant 0.000000e+00 : f32
    %308 = vector.broadcast %cst_123 : f32 to vector<1x128xf32>
    %c0_i32_124 = arith.constant 0 : i32
    %309 = vector.broadcast %c0_i32_124 : i32 to vector<1x128xi32>
    %310 = arith.cmpi sge, %6, %309 : vector<1x128xi32>
    %c32_i32_125 = arith.constant 32 : i32
    %311 = vector.broadcast %c32_i32_125 : i32 to vector<1x128xi32>
    %312 = arith.cmpi slt, %6, %311 : vector<1x128xi32>
    %313 = arith.andi %310, %312 : vector<1x128xi1>
    %314 = arith.select %313, %178, %308 : vector<1x128xi1>, vector<1x128xf32>
    %c32_i32_126 = arith.constant 32 : i32
    %315 = tpu.dynamic_rotate %210 by %c32_i32_126 dim 1 : vector<1x128xf32>, i32 -> vector<1x128xf32>
    %c32_i32_127 = arith.constant 32 : i32
    %316 = vector.broadcast %c32_i32_127 : i32 to vector<1x128xi32>
    %317 = arith.cmpi sge, %6, %316 : vector<1x128xi32>
    %c64_i32_128 = arith.constant 64 : i32
    %318 = vector.broadcast %c64_i32_128 : i32 to vector<1x128xi32>
    %319 = arith.cmpi slt, %6, %318 : vector<1x128xi32>
    %320 = arith.andi %317, %319 : vector<1x128xi1>
    %321 = arith.select %320, %315, %314 : vector<1x128xi1>, vector<1x128xf32>
    %c64_i32_129 = arith.constant 64 : i32
    %322 = tpu.dynamic_rotate %242 by %c64_i32_129 dim 1 : vector<1x128xf32>, i32 -> vector<1x128xf32>
    %c64_i32_130 = arith.constant 64 : i32
    %323 = vector.broadcast %c64_i32_130 : i32 to vector<1x128xi32>
    %324 = arith.cmpi sge, %6, %323 : vector<1x128xi32>
    %c96_i32_131 = arith.constant 96 : i32
    %325 = vector.broadcast %c96_i32_131 : i32 to vector<1x128xi32>
    %326 = arith.cmpi slt, %6, %325 : vector<1x128xi32>
    %327 = arith.andi %324, %326 : vector<1x128xi1>
    %328 = arith.select %327, %322, %321 : vector<1x128xi1>, vector<1x128xf32>
    %c96_i32_132 = arith.constant 96 : i32
    %329 = tpu.dynamic_rotate %274 by %c96_i32_132 dim 1 : vector<1x128xf32>, i32 -> vector<1x128xf32>
    %c96_i32_133 = arith.constant 96 : i32
    %330 = vector.broadcast %c96_i32_133 : i32 to vector<1x128xi32>
    %331 = arith.cmpi sge, %6, %330 : vector<1x128xi32>
    %c128_i32_134 = arith.constant 128 : i32
    %332 = vector.broadcast %c128_i32_134 : i32 to vector<1x128xi32>
    %333 = arith.cmpi slt, %6, %332 : vector<1x128xi32>
    %334 = arith.andi %331, %333 : vector<1x128xi1>
    %335 = arith.select %334, %329, %328 : vector<1x128xi1>, vector<1x128xf32>
    %c1 = arith.constant 1 : index
    %c0_135 = arith.constant 0 : index
    %c0_136 = arith.constant 0 : index
    %336 = vector.load %arg10[%c1, %c0_135, %c0_136] : memref<2x128x128xf32, #tpu.memory_space<vmem>>, vector<1x128x128xf32>
    %337 = vector.shape_cast %336 : vector<1x128x128xf32> to vector<128x128xf32>
    %cst_137 = arith.constant dense<0.000000e+00> : vector<1x128xf32>
    %338 = tpu.matmul %335, %337, %cst_137 {dimension_numbers = #tpu.dot_dimension_numbers<[1], [0], [0], [1], [0, 0, 1, 1], [], []>} : vector<1x128xf32>, vector<128x128xf32>, vector<1x128xf32> -> vector<1x128xf32>
    %339 = arith.addf %307, %338 : vector<1x128xf32>
    %c0_138 = arith.constant 0 : index
    %c0_139 = arith.constant 0 : index
    %340 = vector.load %arg9[%c0_138, %c0_139] : memref<1x128xf32, #tpu.memory_space<vmem>>, vector<1x128xf32>
    tpu.vector_store %arg9[%c0_138, %c0_139], %339 {strides = array<i32>} : memref<1x128xf32, #tpu.memory_space<vmem>>, vector<1x128xf32>,
    return
  }
  func.func @transform_0(%arg0: i32) -> (i32, i32) {
    %c0_i32 = arith.constant 0 : i32
    %c0_i32_0 = arith.constant 0 : i32
    %c0_i32_1 = arith.constant 0 : i32
    return %c0_i32, %c0_i32_0 : i32, i32
  }
  func.func @transform_1(%arg0: i32) -> (i32, i32) {
    %c0_i32 = arith.constant 0 : i32
    %c0_i32_0 = arith.constant 0 : i32
    %c0_i32_1 = arith.constant 0 : i32
    return %c0_i32, %c0_i32_0 : i32, i32
  }
  func.func @transform_2(%arg0: i32) -> (i32, i32) {
    %c0_i32 = arith.constant 0 : i32
    %c0_i32_0 = arith.constant 0 : i32
    %c0_i32_1 = arith.constant 0 : i32
    return %c0_i32, %c0_i32_0 : i32, i32
  }
  func.func @transform_3(%arg0: i32) -> (i32, i32) {
    %c0_i32 = arith.constant 0 : i32
    %c0_i32_0 = arith.constant 0 : i32
    %c0_i32_1 = arith.constant 0 : i32
    return %c0_i32, %c0_i32_0 : i32, i32
  }
  func.func @transform_4(%arg0: i32) -> (i32, i32) {
    %c0_i32 = arith.constant 0 : i32
    %c0_i32_0 = arith.constant 0 : i32
    %c0_i32_1 = arith.constant 0 : i32
    return %c0_i32, %c0_i32_0 : i32, i32
  }
  func.func @transform_5(%arg0: i32) -> (i32, i32) {
    %c0_i32 = arith.constant 0 : i32
    %c0_i32_0 = arith.constant 0 : i32
    %c0_i32_1 = arith.constant 0 : i32
    return %c0_i32, %c0_i32_0 : i32, i32
  }
  func.func @transform_7(%arg0: i32) -> (i32, i32) {
    %c0_i32 = arith.constant 0 : i32
    %c0_i32_0 = arith.constant 0 : i32
    %c0_i32_1 = arith.constant 0 : i32
    return %c0_i32, %c0_i32_0 : i32, i32
  }
  func.func @transform_8(%arg0: i32) -> (i32, i32) {
    %c0_i32 = arith.constant 0 : i32
    %c0_i32_0 = arith.constant 0 : i32
    %c0_i32_1 = arith.constant 0 : i32
    return %c0_i32, %c0_i32_0 : i32, i32
  }
}

</mosaic_0001>

<llo_original>
// kernel: lstm_autoencoder_forward.1
$region0: #{lstm_autoencoder_forward.1}
  #allocation0 [shape = 'u32[]', space=smem, size = 0x4, offset = 0x4, fixed_abs, tag = 'smem constant byte address 0x4 - core index']
  #allocation1 [shape = 'u32[72,128]{1,0:T(1,128)}', space=vmem, size = 0x9000, scoped, tag = 'internal scratch']
  #allocation2 [shape = 'f32[2,128,128]{2,1,0:T(8,128)}', space=vmem, size = 0x20000, scoped, tag = 'scratch operand']
  #allocation3 [shape = 's32[1]{0}', space=sflag, size = 0x4, scoped, tag = 'scratch operand']
  #allocation12 [shape = 's32[]', space=sflag, size = 0x4, offset = 0, fixed_abs, tag = 'sflag constant byte address 0x0 - dummy sync flag']
  #allocation13 [shape = 's32[]', space=sflag, size = 0x4, offset = 0, fixed_abs, tag = 'sflag constant byte address 0x0 - dummy sync flag']
  #allocation14 [shape = 'u32[]', space=smem, size = 0x4, offset = 0x44, fixed_abs, tag = 'smem constant byte address 0x44 - assertion arg 0']
  #allocation15 [shape = 'u32[]', space=smem, size = 0x4, offset = 0x48, fixed_abs, tag = 'smem constant byte address 0x48 - assertion arg 1']
  %s0 = inlined_call_operand.hbm [shape: f32[8,8], index: 0, kind: input, shape index: {}]
  %s1 = inlined_call_operand.hbm [shape: f32[8,128], index: 1, kind: input, shape index: {}]
  %s2 = inlined_call_operand.hbm [shape: f32[128,128], index: 2, kind: input, shape index: {}]
  %s3 = inlined_call_operand.vmem [shape: f32[1,128], index: 3, kind: input, shape index: {}]
  %s4 = inlined_call_operand.hbm [shape: f32[256,128], index: 4, kind: input, shape index: {}]
  %s5 = inlined_call_operand.hbm [shape: f32[1,128], index: 5, kind: input, shape index: {}]
  %s6 = inlined_call_operand.hbm [shape: f32[2,128,128], index: 6, kind: input, shape index: {}]
  %s7 = inlined_call_operand.vmem [shape: f32[1,128], index: 7, kind: input, shape index: {}]
  %s8 = inlined_call_operand.vmem [shape: f32[1,128], index: 8, kind: output, shape index: {}]
  %s9 = sld [smem:[#allocation0]]
  $region62: #{lstm_autoencoder_forward.1} parent=0
    _
  %s11 = ssub.s32 1, %s9
  %s12 = scalar_select 0, %s11, %s9
  $region1: #{lstm_autoencoder_forward.1} parent=0
    #allocation4 [shape = 'u8[4096]{0}', space=vmem, size = 0x1000, scoped, tag = 'input window, operand 0, single buffered']
    #allocation5 [shape = 's32[1]{0}', space=sflag, size = 0x4, scoped, tag = 'scoped memory for lstm_autoencoder_forward.1']
    #allocation6 [shape = 'u8[4096]{0}', space=vmem, size = 0x1000, scoped, tag = 'input window, operand 1, single buffered']
    #allocation7 [shape = 's32[1]{0}', space=sflag, size = 0x4, scoped, tag = 'scoped memory for lstm_autoencoder_forward.1']
    #allocation8 [shape = 'u8[65536]{0}', space=vmem, size = 0x10000, scoped, tag = 'input window, operand 2, single buffered']
    #allocation9 [shape = 'u8[131072]{0}', space=vmem, size = 0x20000, scoped, tag = 'input window, operand 4, single buffered']
    #allocation10 [shape = 's32[1]{0}', space=sflag, size = 0x4, scoped, tag = 'scoped memory for lstm_autoencoder_forward.1']
    #allocation11 [shape = 'u8[512]{0}', space=vmem, size = 0x400, scoped, tag = 'input window, operand 5, single buffered']
    %13 = vsyncpa [#allocation5], 0
    %14 = vsyncpa [#allocation7], 0
    %15 = vsyncpa [#allocation10], 0
    // Predicated region
    $region2: #{lstm_autoencoder_forward.1} parent=1 // pred_check
      _
    $region3: #{lstm_autoencoder_forward.1} parent=1 // pred_check_branch
      %17 = sbr.rel (0) target = $region5
    $region4: #{lstm_autoencoder_forward.1} parent=1 // pred_region
      %19 = vsyncadd [#allocation5], 0
      %s21 = sshll.u32 %s0, 4
      %s22 = int_to_ptr.hbm [resolvable:$true] %s21
      %s23 = sshll.u32 [#allocation4], 4
      %s24 = int_to_ptr.vmem [resolvable:$true] %s23
      %26 = dma.hbm_to_vmem [thread:$0]  %s22, 128, %s24, [#allocation5]
    $region5: #{lstm_autoencoder_forward.1} parent=1 // pred_fallthru
      _
    // Predicated region
    $region6: #{lstm_autoencoder_forward.1} parent=1 // pred_check
      _
    $region7: #{lstm_autoencoder_forward.1} parent=1 // pred_check_branch
      %28 = sbr.rel (0) target = $region9
    $region8: #{lstm_autoencoder_forward.1} parent=1 // pred_region
      %30 = vsyncadd [#allocation7], 0
      %s32 = sshll.u32 %s1, 4
      %s33 = int_to_ptr.hbm [resolvable:$true] %s32
      %s34 = sshll.u32 [#allocation6], 4
      %s35 = int_to_ptr.vmem [resolvable:$true] %s34
      %37 = dma.hbm_to_vmem [thread:$0]  %s33, 128, %s35, [#allocation7]
    $region9: #{lstm_autoencoder_forward.1} parent=1 // pred_fallthru
      _
    // Predicated region
    $region10: #{lstm_autoencoder_forward.1} parent=1 // pred_check
      _
    $region11: #{lstm_autoencoder_forward.1} parent=1 // pred_check_branch
      %39 = sbr.rel (0) target = $region13
    $region12: #{lstm_autoencoder_forward.1} parent=1 // pred_region
      %41 = vsyncadd [#allocation7], 0
      %s42 = sshll.u32 %s2, 4
      %s43 = int_to_ptr.hbm [resolvable:$true] %s42
      %s44 = sshll.u32 [#allocation8], 4
      %s45 = int_to_ptr.vmem [resolvable:$true] %s44
      %50 = dma.hbm_to_vmem [thread:$0]  %s43, 2048, %s45, [#allocation7], 128, 128, 8
    $region13: #{lstm_autoencoder_forward.1} parent=1 // pred_fallthru
      _
    // Predicated region
    $region14: #{lstm_autoencoder_forward.1} parent=1 // pred_check
      _
    $region15: #{lstm_autoencoder_forward.1} parent=1 // pred_check_branch
      %52 = sbr.rel (0) target = $region17
    $region16: #{lstm_autoencoder_forward.1} parent=1 // pred_region
      _
    $region17: #{lstm_autoencoder_forward.1} parent=1 // pred_fallthru
      _
    // Predicated region
    $region18: #{lstm_autoencoder_forward.1} parent=1 // pred_check
      _
    $region19: #{lstm_autoencoder_forward.1} parent=1 // pred_check_branch
      %54 = sbr.rel (0) target = $region21
    $region20: #{lstm_autoencoder_forward.1} parent=1 // pred_region
      %56 = vsyncadd [#allocation10], 0
      %s57 = sshll.u32 %s4, 4
      %s58 = int_to_ptr.hbm [resolvable:$true] %s57
      %s59 = sshll.u32 [#allocation9], 4
      %s60 = int_to_ptr.vmem [resolvable:$true] %s59
      %65 = dma.hbm_to_vmem [thread:$0]  %s58, 4096, %s60, [#allocation10], 128, 128, 8
    $region21: #{lstm_autoencoder_forward.1} parent=1 // pred_fallthru
      _
    // Predicated region
    $region22: #{lstm_autoencoder_forward.1} parent=1 // pred_check
      _
    $region23: #{lstm_autoencoder_forward.1} parent=1 // pred_check_branch
      %67 = sbr.rel (0) target = $region25
    $region24: #{lstm_autoencoder_forward.1} parent=1 // pred_region
      %69 = vsyncadd [#allocation10], 0
      %s71 = sshll.u32 %s5, 4
      %s72 = int_to_ptr.hbm [resolvable:$true] %s71
      %s73 = sshll.u32 [#allocation11], 4
      %s74 = int_to_ptr.vmem [resolvable:$true] %s73
      %76 = dma.hbm_to_vmem [thread:$0]  %s72, 16, %s74, [#allocation10]
    $region25: #{lstm_autoencoder_forward.1} parent=1 // pred_fallthru
      _
    // Predicated region
    $region26: #{lstm_autoencoder_forward.1} parent=1 // pred_check
      _
    $region27: #{lstm_autoencoder_forward.1} parent=1 // pred_check_branch
      %78 = sbr.rel (0) target = $region29
    $region28: #{lstm_autoencoder_forward.1} parent=1 // pred_region
      _
    $region29: #{lstm_autoencoder_forward.1} parent=1 // pred_fallthru
      _
    // Predicated region
    $region30: #{lstm_autoencoder_forward.1} parent=1 // pred_check
      _
    $region31: #{lstm_autoencoder_forward.1} parent=1 // pred_check_branch
      %80 = sbr.rel (0) target = $region33
    $region32: #{lstm_autoencoder_forward.1} parent=1 // pred_region
      %82 = dma.done [#allocation5], 128
    $region33: #{lstm_autoencoder_forward.1} parent=1 // pred_fallthru
      _
    // Predicated region
    $region34: #{lstm_autoencoder_forward.1} parent=1 // pred_check
      _
    $region35: #{lstm_autoencoder_forward.1} parent=1 // pred_check_branch
      %84 = sbr.rel (0) target = $region37
    $region36: #{lstm_autoencoder_forward.1} parent=1 // pred_region
      %86 = dma.done [#allocation7], 128
    $region37: #{lstm_autoencoder_forward.1} parent=1 // pred_fallthru
      _
    // Predicated region
    $region38: #{lstm_autoencoder_forward.1} parent=1 // pred_check
      _
    $region39: #{lstm_autoencoder_forward.1} parent=1 // pred_check_branch
      %88 = sbr.rel (0) target = $region41
    $region40: #{lstm_autoencoder_forward.1} parent=1 // pred_region
      %90 = dma.done [#allocation7], 2048
    $region41: #{lstm_autoencoder_forward.1} parent=1 // pred_fallthru
      _
    // Predicated region
    $region42: #{lstm_autoencoder_forward.1} parent=1 // pred_check
      _
    $region43: #{lstm_autoencoder_forward.1} parent=1 // pred_check_branch
      %92 = sbr.rel (0) target = $region45
    $region44: #{lstm_autoencoder_forward.1} parent=1 // pred_region
      %94 = dma.done [#allocation10], 4096
    $region45: #{lstm_autoencoder_forward.1} parent=1 // pred_fallthru
      _
    // Predicated region
    $region46: #{lstm_autoencoder_forward.1} parent=1 // pred_check
      _
    $region47: #{lstm_autoencoder_forward.1} parent=1 // pred_check_branch
      %96 = sbr.rel (0) target = $region49
    $region48: #{lstm_autoencoder_forward.1} parent=1 // pred_region
      %98 = dma.done [#allocation10], 16
    $region49: #{lstm_autoencoder_forward.1} parent=1 // pred_fallthru
      _
    // Predicated region
    $region50: #{lstm_autoencoder_forward.1} parent=1 // pred_check
      _
    $region51: #{lstm_autoencoder_forward.1} parent=1 // pred_check_branch
      %100 = sbr.rel target = $region53
    $region52: #{lstm_autoencoder_forward.1} parent=1 // pred_region
      %101 = sst [smem:[#allocation14]] [#allocation13]
      %102 = sst [smem:[#allocation15]] [#allocation12]
    $region53: #{lstm_autoencoder_forward.1} parent=1 // pred_fallthru
      _
    %104 = shalt.err (0)
    %s106 = sshll.u32 %s6, 4
    %s107 = int_to_ptr.hbm [resolvable:$true] %s106
    %s108 = sshll.u32 [#allocation2], 4
    %s109 = int_to_ptr.vmem [resolvable:$true] %s108
    %111 = dma.hbm_to_vmem [thread:$0]  %s107, 4096, %s109, [#allocation3]
    %v112 = vld [vmem:[#allocation4] sm:$0xff]
    %v113 = vld [vmem:[#allocation6] sm:$0xff]
    %v114 = vld [vmem:[%s3] sm:$0x1]
    %v116 = vperm.slane %v114, 0
    %vm118 = vcmask 64512
    %v120 = vsel %vm118, %v112, 0
    %122 = vmatpush.msra.mxu0 0.0
    %123 = vmatpush.msra.mxu0 0.0
    %124 = vmatpush.msra.mxu0 0.0
    %125 = vmatpush.msra.mxu0 0.0
    %126 = vmatpush.msra.mxu0 0.0
    %127 = vmatpush.msra.mxu0 0.0
    %128 = vmatpush.msra.mxu0 0.0
    %129 = vmatpush.msra.mxu0 0.0
    %130 = vmatpush.msra.mxu0 0.0
    %131 = vmatpush.msra.mxu0 0.0
    %132 = vmatpush.msra.mxu0 0.0
    %133 = vmatpush.msra.mxu0 0.0
    %134 = vmatpush.msra.mxu0 0.0
    %135 = vmatpush.msra.mxu0 0.0
    %136 = vmatpush.msra.mxu0 0.0
    %137 = vmatpush.msra.mxu0 %v113
    %138 = vmatmul.f32.gmra.mxu0 %v120
    %v139 = vpop.f32.mrf.mxu0
    %v140 = vadd.f32 %v116, %v139
    %141 = vdwg.mxu0
    %v142 = vlaneseq
    %v143 = vand.u32 %v142, 127
    %vm144 = vcmp.lt.s32.totalorder %v143, 96
    %v145 = vsel %vm144, 0.5, 1.0
    %v146 = vsel %vm144, 0.5, 0.0
    %v147 = vld [vmem:[#allocation11] sm:$0x1]
    %v148 = vld [vmem:[#allocation8] sm:$0xff]
    %v149 = vld [vmem:[#allocation8 + $0x8] sm:$0xff]
    %v150 = vld [vmem:[#allocation8 + $0x10] sm:$0xff]
    %v151 = vld [vmem:[#allocation8 + $0x18] sm:$0xff]
    %v152 = vld [vmem:[#allocation8 + $0x20] sm:$0xff]
    %v153 = vld [vmem:[#allocation8 + $0x28] sm:$0xff]
    %v154 = vld [vmem:[#allocation8 + $0x30] sm:$0xff]
    %v155 = vld [vmem:[#allocation8 + $0x38] sm:$0xff]
    %v156 = vld [vmem:[#allocation8 + $0x40] sm:$0xff]
    %v157 = vld [vmem:[#allocation8 + $0x48] sm:$0xff]
    %v158 = vld [vmem:[#allocation8 + $0x50] sm:$0xff]
    %v159 = vld [vmem:[#allocation8 + $0x58] sm:$0xff]
    %v160 = vld [vmem:[#allocation8 + $0x60] sm:$0xff]
    %v161 = vld [vmem:[#allocation8 + $0x68] sm:$0xff]
    %v162 = vld [vmem:[#allocation8 + $0x70] sm:$0xff]
    %v163 = vld [vmem:[#allocation8 + $0x78] sm:$0xff]
    %164 = vmatpush.msra.mxu0 %v163
    %165 = vmatpush.msra.mxu0 %v162
    %166 = vmatpush.msra.mxu0 %v161
    %167 = vmatpush.msra.mxu0 %v160
    %168 = vmatpush.msra.mxu0 %v159
    %169 = vmatpush.msra.mxu0 %v158
    %170 = vmatpush.msra.mxu0 %v157
    %171 = vmatpush.msra.mxu0 %v156
    %172 = vmatpush.msra.mxu0 %v155
    %173 = vmatpush.msra.mxu0 %v154
    %174 = vmatpush.msra.mxu0 %v153
    %175 = vmatpush.msra.mxu0 %v152
    %176 = vmatpush.msra.mxu0 %v151
    %177 = vmatpush.msra.mxu0 %v150
    %178 = vmatpush.msra.mxu0 %v149
    %179 = vmatpush.msra.mxu0 %v148
    %180 = vmatmul.f32.gmra.mxu0 0.0
    %v181 = vpop.f32.mrf.mxu0
    %v182 = vadd.f32 0.0, %v181
    %183 = vdwg.mxu0
    %v184 = vadd.f32 %v140, %v182
    %v185 = vmul.f32 %v145, %v184
    %v186 = vtanh.pop %v185
    %v187 = vmul.f32 %v145, %v186
    %v188 = vadd.f32 %v187, %v146
    %189 = vrot.lane.b32.xlu0 %v188, 96
    %v190 = vpop.permute.xlu0 %189
    %191 = vrot.lane.b32.xlu0 %v188, 64
    %v192 = vpop.permute.xlu0 %191
    %193 = vrot.lane.b32.xlu0 %v188, 32
    %v194 = vpop.permute.xlu0 %193
    %v195 = vmul.f32 %v190, 0.0
    %v196 = vmul.f32 %v188, %v194
    %v197 = vadd.f32 %v195, %v196
    %v198 = vtanh.pop %v197
    %v199 = vmul.f32 %v192, %v198
    %v200 = vld [vmem:[#allocation9] sm:$0xff]
    %v201 = vld [vmem:[#allocation9 + $0x8] sm:$0xff]
    %v202 = vld [vmem:[#allocation9 + $0x10] sm:$0xff]
    %v203 = vld [vmem:[#allocation9 + $0x18] sm:$0xff]
    %v204 = vld [vmem:[#allocation9 + $0x20] sm:$0xff]
    %v205 = vld [vmem:[#allocation9 + $0x28] sm:$0xff]
    %v206 = vld [vmem:[#allocation9 + $0x30] sm:$0xff]
    %v207 = vld [vmem:[#allocation9 + $0x38] sm:$0xff]
    %v208 = vld [vmem:[#allocation9 + $0x40] sm:$0xff]
    %v209 = vld [vmem:[#allocation9 + $0x48] sm:$0xff]
    %v210 = vld [vmem:[#allocation9 + $0x50] sm:$0xff]
    %v211 = vld [vmem:[#allocation9 + $0x58] sm:$0xff]
    %v212 = vld [vmem:[#allocation9 + $0x60] sm:$0xff]
    %v213 = vld [vmem:[#allocation9 + $0x68] sm:$0xff]
    %v214 = vld [vmem:[#allocation9 + $0x70] sm:$0xff]
    %v215 = vld [vmem:[#allocation9 + $0x78] sm:$0xff]
    %v216 = vld [vmem:[#allocation9 + $0x80] sm:$0xff]
    %v217 = vld [vmem:[#allocation9 + $0x88] sm:$0xff]
    %v218 = vld [vmem:[#allocation9 + $0x90] sm:$0xff]
    %v219 = vld [vmem:[#allocation9 + $0x98] sm:$0xff]
    %v220 = vld [vmem:[#allocation9 + $0xa0] sm:$0xff]
    %v221 = vld [vmem:[#allocation9 + $0xa8] sm:$0xff]
    %v222 = vld [vmem:[#allocation9 + $0xb0] sm:$0xff]
    %v223 = vld [vmem:[#allocation9 + $0xb8] sm:$0xff]
    %v224 = vld [vmem:[#allocation9 + $0xc0] sm:$0xff]
    %v225 = vld [vmem:[#allocation9 + $0xc8] sm:$0xff]
    %v226 = vld [vmem:[#allocation9 + $0xd0] sm:$0xff]
    %v227 = vld [vmem:[#allocation9 + $0xd8] sm:$0xff]
    %v228 = vld [vmem:[#allocation9 + $0xe0] sm:$0xff]
    %v229 = vld [vmem:[#allocation9 + $0xe8] sm:$0xff]
    %v230 = vld [vmem:[#allocation9 + $0xf0] sm:$0xff]
    %v231 = vld [vmem:[#allocation9 + $0xf8] sm:$0xff]
    %232 = vmatpush.msra.mxu0 %v215
    %233 = vmatpush.msra.mxu0 %v214
    %234 = vmatpush.msra.mxu0 %v213
    %235 = vmatpush.msra.mxu0 %v212
    %236 = vmatpush.msra.mxu0 %v211
    %237 = vmatpush.msra.mxu0 %v210
    %238 = vmatpush.msra.mxu0 %v209
    %239 = vmatpush.msra.mxu0 %v208
    %240 = vmatpush.msra.mxu0 %v207
    %241 = vmatpush.msra.mxu0 %v206
    %242 = vmatpush.msra.mxu0 %v205
    %243 = vmatpush.msra.mxu0 %v204
    %244 = vmatpush.msra.mxu0 %v203
    %245 = vmatpush.msra.mxu0 %v202
    %246 = vmatpush.msra.mxu0 %v201
    %247 = vmatpush.msra.mxu0 %v200
    %248 = vmatmul.f32.gmra.mxu0 %v199
    %v249 = vpop.f32.mrf.mxu0
    %v250 = vadd.f32 0.0, %v249
    %251 = vdwg.mxu0
    %252 = vmatpush.msra.mxu0 %v231
    %253 = vmatpush.msra.mxu0 %v230
    %254 = vmatpush.msra.mxu0 %v229
    %255 = vmatpush.msra.mxu0 %v228
    %256 = vmatpush.msra.mxu0 %v227
    %257 = vmatpush.msra.mxu0 %v226
    %258 = vmatpush.msra.mxu0 %v225
    %259 = vmatpush.msra.mxu0 %v224
    %260 = vmatpush.msra.mxu0 %v223
    %261 = vmatpush.msra.mxu0 %v222
    %262 = vmatpush.msra.mxu0 %v221
    %263 = vmatpush.msra.mxu0 %v220
    %264 = vmatpush.msra.mxu0 %v219
    %265 = vmatpush.msra.mxu0 %v218
    %266 = vmatpush.msra.mxu0 %v217
    %267 = vmatpush.msra.mxu0 %v216
    %268 = vmatmul.f32.gmra.mxu0 0.0
    %v269 = vpop.f32.mrf.mxu0
    %v270 = vadd.f32 %v250, %v269
    %271 = vdwg.mxu0
    %v272 = vadd.f32 %v147, %v270
    %v273 = vmul.f32 %v145, %v272
    %v274 = vtanh.pop %v273
    %v275 = vmul.f32 %v145, %v274
    %v276 = vadd.f32 %v275, %v146
    %277 = vrot.lane.b32.xlu0 %v276, 96
    %v278 = vpop.permute.xlu0 %277
    %279 = vrot.lane.b32.xlu0 %v276, 64
    %v280 = vpop.permute.xlu0 %279
    %281 = vrot.lane.b32.xlu0 %v276, 32
    %v282 = vpop.permute.xlu0 %281
    %v283 = vmul.f32 %v278, 0.0
    %v284 = vmul.f32 %v276, %v282
    %v285 = vadd.f32 %v283, %v284
    %v286 = vtanh.pop %v285
    %v287 = vmul.f32 %v280, %v286
    %288 = vmatpush.msra.mxu0 %v163
    %289 = vmatpush.msra.mxu0 %v162
    %290 = vmatpush.msra.mxu0 %v161
    %291 = vmatpush.msra.mxu0 %v160
    %292 = vmatpush.msra.mxu0 %v159
    %293 = vmatpush.msra.mxu0 %v158
    %294 = vmatpush.msra.mxu0 %v157
    %295 = vmatpush.msra.mxu0 %v156
    %296 = vmatpush.msra.mxu0 %v155
    %297 = vmatpush.msra.mxu0 %v154
    %298 = vmatpush.msra.mxu0 %v153
    %299 = vmatpush.msra.mxu0 %v152
    %300 = vmatpush.msra.mxu0 %v151
    %301 = vmatpush.msra.mxu0 %v150
    %302 = vmatpush.msra.mxu0 %v149
    %303 = vmatpush.msra.mxu0 %v148
    %304 = vmatmul.f32.gmra.mxu0 %v199
    %v305 = vpop.f32.mrf.mxu0
    %v306 = vadd.f32 0.0, %v305
    %307 = vdwg.mxu0
    %v309 = vrot.slane %v306, 7
    %v311 = vadd.f32 %v140, %v309
    %v312 = vmul.f32 %v145, %v311
    %v313 = vtanh.pop %v312
    %v314 = vmul.f32 %v145, %v313
    %v315 = vadd.f32 %v314, %v146
    %v317 = vrot.slane %v315, 1
    %319 = vrot.lane.b32.xlu0 %v317, 96
    %v320 = vpop.permute.xlu0 %319
    %321 = vrot.lane.b32.xlu0 %v317, 64
    %v322 = vpop.permute.xlu0 %321
    %323 = vrot.lane.b32.xlu0 %v317, 32
    %v324 = vpop.permute.xlu0 %323
    %v325 = vmul.f32 %v320, %v197
    %v327 = vrot.slane %v324, 7
    %v329 = vmul.f32 %v315, %v327
    %v331 = vrot.slane %v329, 1
    %v333 = vadd.f32 %v325, %v331
    %v334 = vtanh.pop %v333
    %v335 = vmul.f32 %v322, %v334
    %336 = vmatpush.msra.mxu0 %v215
    %337 = vmatpush.msra.mxu0 %v214
    %338 = vmatpush.msra.mxu0 %v213
    %339 = vmatpush.msra.mxu0 %v212
    %340 = vmatpush.msra.mxu0 %v211
    %341 = vmatpush.msra.mxu0 %v210
    %342 = vmatpush.msra.mxu0 %v209
    %343 = vmatpush.msra.mxu0 %v208
    %344 = vmatpush.msra.mxu0 %v207
    %345 = vmatpush.msra.mxu0 %v206
    %346 = vmatpush.msra.mxu0 %v205
    %347 = vmatpush.msra.mxu0 %v204
    %348 = vmatpush.msra.mxu0 %v203
    %349 = vmatpush.msra.mxu0 %v202
    %350 = vmatpush.msra.mxu0 %v201
    %351 = vmatpush.msra.mxu0 %v200
    %352 = vmatmul.f32.gmra.mxu0 %v335
    %v353 = vpop.f32.mrf.mxu0
    %v354 = vadd.f32 0.0, %v353
    %355 = vdwg.mxu0
    %356 = vmatpush.msra.mxu0 %v231
    %357 = vmatpush.msra.mxu0 %v230
    %358 = vmatpush.msra.mxu0 %v229
    %359 = vmatpush.msra.mxu0 %v228
    %360 = vmatpush.msra.mxu0 %v227
    %361 = vmatpush.msra.mxu0 %v226
    %362 = vmatpush.msra.mxu0 %v225
    %363 = vmatpush.msra.mxu0 %v224
    %364 = vmatpush.msra.mxu0 %v223
    %365 = vmatpush.msra.mxu0 %v222
    %366 = vmatpush.msra.mxu0 %v221
    %367 = vmatpush.msra.mxu0 %v220
    %368 = vmatpush.msra.mxu0 %v219
    %369 = vmatpush.msra.mxu0 %v218
    %370 = vmatpush.msra.mxu0 %v217
    %371 = vmatpush.msra.mxu0 %v216
    %372 = vmatmul.f32.gmra.mxu0 %v287
    %v373 = vpop.f32.mrf.mxu0
    %v374 = vadd.f32 %v354, %v373
    %375 = vdwg.mxu0
    %v376 = vadd.f32 %v147, %v374
    %v377 = vmul.f32 %v145, %v376
    %v378 = vtanh.pop %v377
    %v379 = vmul.f32 %v145, %v378
    %v380 = vadd.f32 %v379, %v146
    %381 = vrot.lane.b32.xlu0 %v380, 96
    %v382 = vpop.permute.xlu0 %381
    %383 = vrot.lane.b32.xlu0 %v380, 64
    %v384 = vpop.permute.xlu0 %383
    %385 = vrot.lane.b32.xlu0 %v380, 32
    %v386 = vpop.permute.xlu0 %385
    %v387 = vmul.f32 %v382, %v285
    %v388 = vmul.f32 %v380, %v386
    %v389 = vadd.f32 %v387, %v388
    %v390 = vtanh.pop %v389
    %v391 = vmul.f32 %v384, %v390
    %392 = vmatpush.msra.mxu0 %v163
    %393 = vmatpush.msra.mxu0 %v162
    %394 = vmatpush.msra.mxu0 %v161
    %395 = vmatpush.msra.mxu0 %v160
    %396 = vmatpush.msra.mxu0 %v159
    %397 = vmatpush.msra.mxu0 %v158
    %398 = vmatpush.msra.mxu0 %v157
    %399 = vmatpush.msra.mxu0 %v156
    %400 = vmatpush.msra.mxu0 %v155
    %401 = vmatpush.msra.mxu0 %v154
    %402 = vmatpush.msra.mxu0 %v153
    %403 = vmatpush.msra.mxu0 %v152
    %404 = vmatpush.msra.mxu0 %v151
    %405 = vmatpush.msra.mxu0 %v150
    %406 = vmatpush.msra.mxu0 %v149
    %407 = vmatpush.msra.mxu0 %v148
    %408 = vmatmul.f32.gmra.mxu0 %v335
    %v409 = vpop.f32.mrf.mxu0
    %v410 = vadd.f32 0.0, %v409
    %411 = vdwg.mxu0
    %v413 = vrot.slane %v410, 6
    %v415 = vadd.f32 %v140, %v413
    %v416 = vmul.f32 %v145, %v415
    %v417 = vtanh.pop %v416
    %v418 = vmul.f32 %v145, %v417
    %v419 = vadd.f32 %v418, %v146
    %v421 = vrot.slane %v419, 2
    %423 = vrot.lane.b32.xlu0 %v421, 96
    %v424 = vpop.permute.xlu0 %423
    %425 = vrot.lane.b32.xlu0 %v421, 64
    %v426 = vpop.permute.xlu0 %425
    %427 = vrot.lane.b32.xlu0 %v421, 32
    %v428 = vpop.permute.xlu0 %427
    %v429 = vmul.f32 %v424, %v333
    %v431 = vrot.slane %v428, 6
    %v433 = vmul.f32 %v419, %v431
    %v435 = vrot.slane %v433, 2
    %v437 = vadd.f32 %v429, %v435
    %v438 = vtanh.pop %v437
    %v439 = vmul.f32 %v426, %v438
    %440 = vmatpush.msra.mxu0 %v215
    %441 = vmatpush.msra.mxu0 %v214
    %442 = vmatpush.msra.mxu0 %v213
    %443 = vmatpush.msra.mxu0 %v212
    %444 = vmatpush.msra.mxu0 %v211
    %445 = vmatpush.msra.mxu0 %v210
    %446 = vmatpush.msra.mxu0 %v209
    %447 = vmatpush.msra.mxu0 %v208
    %448 = vmatpush.msra.mxu0 %v207
    %449 = vmatpush.msra.mxu0 %v206
    %450 = vmatpush.msra.mxu0 %v205
    %451 = vmatpush.msra.mxu0 %v204
    %452 = vmatpush.msra.mxu0 %v203
    %453 = vmatpush.msra.mxu0 %v202
    %454 = vmatpush.msra.mxu0 %v201
    %455 = vmatpush.msra.mxu0 %v200
    %456 = vmatmul.f32.gmra.mxu0 %v439
    %v457 = vpop.f32.mrf.mxu0
    %v458 = vadd.f32 0.0, %v457
    %459 = vdwg.mxu0
    %460 = vmatpush.msra.mxu0 %v231
    %461 = vmatpush.msra.mxu0 %v230
    %462 = vmatpush.msra.mxu0 %v229
    %463 = vmatpush.msra.mxu0 %v228
    %464 = vmatpush.msra.mxu0 %v227
    %465 = vmatpush.msra.mxu0 %v226
    %466 = vmatpush.msra.mxu0 %v225
    %467 = vmatpush.msra.mxu0 %v224
    %468 = vmatpush.msra.mxu0 %v223
    %469 = vmatpush.msra.mxu0 %v222
    %470 = vmatpush.msra.mxu0 %v221
    %471 = vmatpush.msra.mxu0 %v220
    %472 = vmatpush.msra.mxu0 %v219
    %473 = vmatpush.msra.mxu0 %v218
    %474 = vmatpush.msra.mxu0 %v217
    %475 = vmatpush.msra.mxu0 %v216
    %476 = vmatmul.f32.gmra.mxu0 %v391
    %v477 = vpop.f32.mrf.mxu0
    %v478 = vadd.f32 %v458, %v477
    %479 = vdwg.mxu0
    %v480 = vadd.f32 %v147, %v478
    %v481 = vmul.f32 %v145, %v480
    %v482 = vtanh.pop %v481
    %v483 = vmul.f32 %v145, %v482
    %v484 = vadd.f32 %v483, %v146
    %485 = vrot.lane.b32.xlu0 %v484, 96
    %v486 = vpop.permute.xlu0 %485
    %487 = vrot.lane.b32.xlu0 %v484, 64
    %v488 = vpop.permute.xlu0 %487
    %489 = vrot.lane.b32.xlu0 %v484, 32
    %v490 = vpop.permute.xlu0 %489
    %v491 = vmul.f32 %v486, %v389
    %v492 = vmul.f32 %v484, %v490
    %v493 = vadd.f32 %v491, %v492
    %v494 = vtanh.pop %v493
    %v495 = vmul.f32 %v488, %v494
    %496 = vmatpush.msra.mxu0 %v163
    %497 = vmatpush.msra.mxu0 %v162
    %498 = vmatpush.msra.mxu0 %v161
    %499 = vmatpush.msra.mxu0 %v160
    %500 = vmatpush.msra.mxu0 %v159
    %501 = vmatpush.msra.mxu0 %v158
    %502 = vmatpush.msra.mxu0 %v157
    %503 = vmatpush.msra.mxu0 %v156
    %504 = vmatpush.msra.mxu0 %v155
    %505 = vmatpush.msra.mxu0 %v154
    %506 = vmatpush.msra.mxu0 %v153
    %507 = vmatpush.msra.mxu0 %v152
    %508 = vmatpush.msra.mxu0 %v151
    %509 = vmatpush.msra.mxu0 %v150
    %510 = vmatpush.msra.mxu0 %v149
    %511 = vmatpush.msra.mxu0 %v148
    %512 = vmatmul.f32.gmra.mxu0 %v439
    %v513 = vpop.f32.mrf.mxu0
    %v514 = vadd.f32 0.0, %v513
    %515 = vdwg.mxu0
    %v517 = vrot.slane %v514, 5
    %v519 = vadd.f32 %v140, %v517
    %v520 = vmul.f32 %v145, %v519
    %v521 = vtanh.pop %v520
    %v522 = vmul.f32 %v145, %v521
    %v523 = vadd.f32 %v522, %v146
    %v525 = vrot.slane %v523, 3
    %527 = vrot.lane.b32.xlu0 %v525, 96
    %v528 = vpop.permute.xlu0 %527
    %529 = vrot.lane.b32.xlu0 %v525, 64
    %v530 = vpop.permute.xlu0 %529
    %531 = vrot.lane.b32.xlu0 %v525, 32
    %v532 = vpop.permute.xlu0 %531
    %v533 = vmul.f32 %v528, %v437
    %v535 = vrot.slane %v532, 5
    %v537 = vmul.f32 %v523, %v535
    %v539 = vrot.slane %v537, 3
    %v541 = vadd.f32 %v533, %v539
    %v542 = vtanh.pop %v541
    %v543 = vmul.f32 %v530, %v542
    %544 = vmatpush.msra.mxu0 %v215
    %545 = vmatpush.msra.mxu0 %v214
    %546 = vmatpush.msra.mxu0 %v213
    %547 = vmatpush.msra.mxu0 %v212
    %548 = vmatpush.msra.mxu0 %v211
    %549 = vmatpush.msra.mxu0 %v210
    %550 = vmatpush.msra.mxu0 %v209
    %551 = vmatpush.msra.mxu0 %v208
    %552 = vmatpush.msra.mxu0 %v207
    %553 = vmatpush.msra.mxu0 %v206
    %554 = vmatpush.msra.mxu0 %v205
    %555 = vmatpush.msra.mxu0 %v204
    %556 = vmatpush.msra.mxu0 %v203
    %557 = vmatpush.msra.mxu0 %v202
    %558 = vmatpush.msra.mxu0 %v201
    %559 = vmatpush.msra.mxu0 %v200
    %560 = vmatmul.f32.gmra.mxu0 %v543
    %v561 = vpop.f32.mrf.mxu0
    %v562 = vadd.f32 0.0, %v561
    %563 = vdwg.mxu0
    %564 = vmatpush.msra.mxu0 %v231
    %565 = vmatpush.msra.mxu0 %v230
    %566 = vmatpush.msra.mxu0 %v229
    %567 = vmatpush.msra.mxu0 %v228
    %568 = vmatpush.msra.mxu0 %v227
    %569 = vmatpush.msra.mxu0 %v226
    %570 = vmatpush.msra.mxu0 %v225
    %571 = vmatpush.msra.mxu0 %v224
    %572 = vmatpush.msra.mxu0 %v223
    %573 = vmatpush.msra.mxu0 %v222
    %574 = vmatpush.msra.mxu0 %v221
    %575 = vmatpush.msra.mxu0 %v220
    %576 = vmatpush.msra.mxu0 %v219
    %577 = vmatpush.msra.mxu0 %v218
    %578 = vmatpush.msra.mxu0 %v217
    %579 = vmatpush.msra.mxu0 %v216
    %580 = vmatmul.f32.gmra.mxu0 %v495
    %v581 = vpop.f32.mrf.mxu0
    %v582 = vadd.f32 %v562, %v581
    %583 = vdwg.mxu0
    %v584 = vadd.f32 %v147, %v582
    %v585 = vmul.f32 %v145, %v584
    %v586 = vtanh.pop %v585
    %v587 = vmul.f32 %v145, %v586
    %v588 = vadd.f32 %v587, %v146
    %589 = vrot.lane.b32.xlu0 %v588, 96
    %v590 = vpop.permute.xlu0 %589
    %591 = vrot.lane.b32.xlu0 %v588, 64
    %v592 = vpop.permute.xlu0 %591
    %593 = vrot.lane.b32.xlu0 %v588, 32
    %v594 = vpop.permute.xlu0 %593
    %v595 = vmul.f32 %v590, %v493
    %v596 = vmul.f32 %v588, %v594
    %v597 = vadd.f32 %v595, %v596
    %v598 = vtanh.pop %v597
    %v599 = vmul.f32 %v592, %v598
    %600 = vmatpush.msra.mxu0 %v163
    %601 = vmatpush.msra.mxu0 %v162
    %602 = vmatpush.msra.mxu0 %v161
    %603 = vmatpush.msra.mxu0 %v160
    %604 = vmatpush.msra.mxu0 %v159
    %605 = vmatpush.msra.mxu0 %v158
    %606 = vmatpush.msra.mxu0 %v157
    %607 = vmatpush.msra.mxu0 %v156
    %608 = vmatpush.msra.mxu0 %v155
    %609 = vmatpush.msra.mxu0 %v154
    %610 = vmatpush.msra.mxu0 %v153
    %611 = vmatpush.msra.mxu0 %v152
    %612 = vmatpush.msra.mxu0 %v151
    %613 = vmatpush.msra.mxu0 %v150
    %614 = vmatpush.msra.mxu0 %v149
    %615 = vmatpush.msra.mxu0 %v148
    %616 = vmatmul.f32.gmra.mxu0 %v543
    %v617 = vpop.f32.mrf.mxu0
    %v618 = vadd.f32 0.0, %v617
    %619 = vdwg.mxu0
    %v621 = vrot.slane %v618, 4
    %v623 = vadd.f32 %v140, %v621
    %v624 = vmul.f32 %v145, %v623
    %v625 = vtanh.pop %v624
    %v626 = vmul.f32 %v145, %v625
    %v627 = vadd.f32 %v626, %v146
    %v629 = vrot.slane %v627, 4
    %631 = vrot.lane.b32.xlu0 %v629, 96
    %v632 = vpop.permute.xlu0 %631
    %633 = vrot.lane.b32.xlu0 %v629, 64
    %v634 = vpop.permute.xlu0 %633
    %635 = vrot.lane.b32.xlu0 %v629, 32
    %v636 = vpop.permute.xlu0 %635
    %v637 = vmul.f32 %v632, %v541
    %v639 = vrot.slane %v636, 4
    %v641 = vmul.f32 %v627, %v639
    %v643 = vrot.slane %v641, 4
    %v645 = vadd.f32 %v637, %v643
    %v646 = vtanh.pop %v645
    %v647 = vmul.f32 %v634, %v646
    %648 = vmatpush.msra.mxu0 %v215
    %649 = vmatpush.msra.mxu0 %v214
    %650 = vmatpush.msra.mxu0 %v213
    %651 = vmatpush.msra.mxu0 %v212
    %652 = vmatpush.msra.mxu0 %v211
    %653 = vmatpush.msra.mxu0 %v210
    %654 = vmatpush.msra.mxu0 %v209
    %655 = vmatpush.msra.mxu0 %v208
    %656 = vmatpush.msra.mxu0 %v207
    %657 = vmatpush.msra.mxu0 %v206
    %658 = vmatpush.msra.mxu0 %v205
    %659 = vmatpush.msra.mxu0 %v204
    %660 = vmatpush.msra.mxu0 %v203
    %661 = vmatpush.msra.mxu0 %v202
    %662 = vmatpush.msra.mxu0 %v201
    %663 = vmatpush.msra.mxu0 %v200
    %664 = vmatmul.f32.gmra.mxu0 %v647
    %v665 = vpop.f32.mrf.mxu0
    %v666 = vadd.f32 0.0, %v665
    %667 = vdwg.mxu0
    %668 = vmatpush.msra.mxu0 %v231
    %669 = vmatpush.msra.mxu0 %v230
    %670 = vmatpush.msra.mxu0 %v229
    %671 = vmatpush.msra.mxu0 %v228
    %672 = vmatpush.msra.mxu0 %v227
    %673 = vmatpush.msra.mxu0 %v226
    %674 = vmatpush.msra.mxu0 %v225
    %675 = vmatpush.msra.mxu0 %v224
    %676 = vmatpush.msra.mxu0 %v223
    %677 = vmatpush.msra.mxu0 %v222
    %678 = vmatpush.msra.mxu0 %v221
    %679 = vmatpush.msra.mxu0 %v220
    %680 = vmatpush.msra.mxu0 %v219
    %681 = vmatpush.msra.mxu0 %v218
    %682 = vmatpush.msra.mxu0 %v217
    %683 = vmatpush.msra.mxu0 %v216
    %684 = vmatmul.f32.gmra.mxu0 %v599
    %v685 = vpop.f32.mrf.mxu0
    %v686 = vadd.f32 %v666, %v685
    %687 = vdwg.mxu0
    %v688 = vadd.f32 %v147, %v686
    %v689 = vmul.f32 %v145, %v688
    %v690 = vtanh.pop %v689
    %v691 = vmul.f32 %v145, %v690
    %v692 = vadd.f32 %v691, %v146
    %693 = vrot.lane.b32.xlu0 %v692, 96
    %v694 = vpop.permute.xlu0 %693
    %695 = vrot.lane.b32.xlu0 %v692, 64
    %v696 = vpop.permute.xlu0 %695
    %697 = vrot.lane.b32.xlu0 %v692, 32
    %v698 = vpop.permute.xlu0 %697
    %v699 = vmul.f32 %v694, %v597
    %v700 = vmul.f32 %v692, %v698
    %v701 = vadd.f32 %v699, %v700
    %v702 = vtanh.pop %v701
    %v703 = vmul.f32 %v696, %v702
    %704 = vmatpush.msra.mxu0 %v163
    %705 = vmatpush.msra.mxu0 %v162
    %706 = vmatpush.msra.mxu0 %v161
    %707 = vmatpush.msra.mxu0 %v160
    %708 = vmatpush.msra.mxu0 %v159
    %709 = vmatpush.msra.mxu0 %v158
    %710 = vmatpush.msra.mxu0 %v157
    %711 = vmatpush.msra.mxu0 %v156
    %712 = vmatpush.msra.mxu0 %v155
    %713 = vmatpush.msra.mxu0 %v154
    %714 = vmatpush.msra.mxu0 %v153
    %715 = vmatpush.msra.mxu0 %v152
    %716 = vmatpush.msra.mxu0 %v151
    %717 = vmatpush.msra.mxu0 %v150
    %718 = vmatpush.msra.mxu0 %v149
    %719 = vmatpush.msra.mxu0 %v148
    %720 = vmatmul.f32.gmra.mxu0 %v647
    %v721 = vpop.f32.mrf.mxu0
    %v722 = vadd.f32 0.0, %v721
    %723 = vdwg.mxu0
    %v725 = vrot.slane %v722, 3
    %v727 = vadd.f32 %v140, %v725
    %v728 = vmul.f32 %v145, %v727
    %v729 = vtanh.pop %v728
    %v730 = vmul.f32 %v145, %v729
    %v731 = vadd.f32 %v730, %v146
    %v733 = vrot.slane %v731, 5
    %735 = vrot.lane.b32.xlu0 %v733, 96
    %v736 = vpop.permute.xlu0 %735
    %737 = vrot.lane.b32.xlu0 %v733, 64
    %v738 = vpop.permute.xlu0 %737
    %739 = vrot.lane.b32.xlu0 %v733, 32
    %v740 = vpop.permute.xlu0 %739
    %v741 = vmul.f32 %v736, %v645
    %v743 = vrot.slane %v740, 3
    %v745 = vmul.f32 %v731, %v743
    %v747 = vrot.slane %v745, 5
    %v749 = vadd.f32 %v741, %v747
    %v750 = vtanh.pop %v749
    %v751 = vmul.f32 %v738, %v750
    %752 = vmatpush.msra.mxu0 %v215
    %753 = vmatpush.msra.mxu0 %v214
    %754 = vmatpush.msra.mxu0 %v213
    %755 = vmatpush.msra.mxu0 %v212
    %756 = vmatpush.msra.mxu0 %v211
    %757 = vmatpush.msra.mxu0 %v210
    %758 = vmatpush.msra.mxu0 %v209
    %759 = vmatpush.msra.mxu0 %v208
    %760 = vmatpush.msra.mxu0 %v207
    %761 = vmatpush.msra.mxu0 %v206
    %762 = vmatpush.msra.mxu0 %v205
    %763 = vmatpush.msra.mxu0 %v204
    %764 = vmatpush.msra.mxu0 %v203
    %765 = vmatpush.msra.mxu0 %v202
    %766 = vmatpush.msra.mxu0 %v201
    %767 = vmatpush.msra.mxu0 %v200
    %768 = vmatmul.f32.gmra.mxu0 %v751
    %v769 = vpop.f32.mrf.mxu0
    %v770 = vadd.f32 0.0, %v769
    %771 = vdwg.mxu0
    %772 = vmatpush.msra.mxu0 %v231
    %773 = vmatpush.msra.mxu0 %v230
    %774 = vmatpush.msra.mxu0 %v229
    %775 = vmatpush.msra.mxu0 %v228
    %776 = vmatpush.msra.mxu0 %v227
    %777 = vmatpush.msra.mxu0 %v226
    %778 = vmatpush.msra.mxu0 %v225
    %779 = vmatpush.msra.mxu0 %v224
    %780 = vmatpush.msra.mxu0 %v223
    %781 = vmatpush.msra.mxu0 %v222
    %782 = vmatpush.msra.mxu0 %v221
    %783 = vmatpush.msra.mxu0 %v220
    %784 = vmatpush.msra.mxu0 %v219
    %785 = vmatpush.msra.mxu0 %v218
    %786 = vmatpush.msra.mxu0 %v217
    %787 = vmatpush.msra.mxu0 %v216
    %788 = vmatmul.f32.gmra.mxu0 %v703
    %v789 = vpop.f32.mrf.mxu0
    %v790 = vadd.f32 %v770, %v789
    %791 = vdwg.mxu0
    %v792 = vadd.f32 %v147, %v790
    %v793 = vmul.f32 %v145, %v792
    %v794 = vtanh.pop %v793
    %v795 = vmul.f32 %v145, %v794
    %v796 = vadd.f32 %v795, %v146
    %797 = vrot.lane.b32.xlu0 %v796, 96
    %v798 = vpop.permute.xlu0 %797
    %799 = vrot.lane.b32.xlu0 %v796, 64
    %v800 = vpop.permute.xlu0 %799
    %801 = vrot.lane.b32.xlu0 %v796, 32
    %v802 = vpop.permute.xlu0 %801
    %v803 = vmul.f32 %v798, %v701
    %v804 = vmul.f32 %v796, %v802
    %v805 = vadd.f32 %v803, %v804
    %v806 = vtanh.pop %v805
    %v807 = vmul.f32 %v800, %v806
    %808 = vmatpush.msra.mxu0 %v163
    %809 = vmatpush.msra.mxu0 %v162
    %810 = vmatpush.msra.mxu0 %v161
    %811 = vmatpush.msra.mxu0 %v160
    %812 = vmatpush.msra.mxu0 %v159
    %813 = vmatpush.msra.mxu0 %v158
    %814 = vmatpush.msra.mxu0 %v157
    %815 = vmatpush.msra.mxu0 %v156
    %816 = vmatpush.msra.mxu0 %v155
    %817 = vmatpush.msra.mxu0 %v154
    %818 = vmatpush.msra.mxu0 %v153
    %819 = vmatpush.msra.mxu0 %v152
    %820 = vmatpush.msra.mxu0 %v151
    %821 = vmatpush.msra.mxu0 %v150
    %822 = vmatpush.msra.mxu0 %v149
    %823 = vmatpush.msra.mxu0 %v148
    %824 = vmatmul.f32.gmra.mxu0 %v751
    %v825 = vpop.f32.mrf.mxu0
    %v826 = vadd.f32 0.0, %v825
    %827 = vdwg.mxu0
    %v829 = vrot.slane %v826, 2
    %v831 = vadd.f32 %v140, %v829
    %v832 = vmul.f32 %v145, %v831
    %v833 = vtanh.pop %v832
    %v834 = vmul.f32 %v145, %v833
    %v835 = vadd.f32 %v834, %v146
    %v837 = vrot.slane %v835, 6
    %839 = vrot.lane.b32.xlu0 %v837, 96
    %v840 = vpop.permute.xlu0 %839
    %841 = vrot.lane.b32.xlu0 %v837, 64
    %v842 = vpop.permute.xlu0 %841
    %843 = vrot.lane.b32.xlu0 %v837, 32
    %v844 = vpop.permute.xlu0 %843
    %v845 = vmul.f32 %v840, %v749
    %v847 = vrot.slane %v844, 2
    %v849 = vmul.f32 %v835, %v847
    %v851 = vrot.slane %v849, 6
    %v853 = vadd.f32 %v845, %v851
    %v854 = vtanh.pop %v853
    %v855 = vmul.f32 %v842, %v854
    %856 = vmatpush.msra.mxu0 %v215
    %857 = vmatpush.msra.mxu0 %v214
    %858 = vmatpush.msra.mxu0 %v213
    %859 = vmatpush.msra.mxu0 %v212
    %860 = vmatpush.msra.mxu0 %v211
    %861 = vmatpush.msra.mxu0 %v210
    %862 = vmatpush.msra.mxu0 %v209
    %863 = vmatpush.msra.mxu0 %v208
    %864 = vmatpush.msra.mxu0 %v207
    %865 = vmatpush.msra.mxu0 %v206
    %866 = vmatpush.msra.mxu0 %v205
    %867 = vmatpush.msra.mxu0 %v204
    %868 = vmatpush.msra.mxu0 %v203
    %869 = vmatpush.msra.mxu0 %v202
    %870 = vmatpush.msra.mxu0 %v201
    %871 = vmatpush.msra.mxu0 %v200
    %872 = vmatmul.f32.gmra.mxu0 %v855
    %v873 = vpop.f32.mrf.mxu0
    %v874 = vadd.f32 0.0, %v873
    %875 = vdwg.mxu0
    %876 = vmatpush.msra.mxu0 %v231
    %877 = vmatpush.msra.mxu0 %v230
    %878 = vmatpush.msra.mxu0 %v229
    %879 = vmatpush.msra.mxu0 %v228
    %880 = vmatpush.msra.mxu0 %v227
    %881 = vmatpush.msra.mxu0 %v226
    %882 = vmatpush.msra.mxu0 %v225
    %883 = vmatpush.msra.mxu0 %v224
    %884 = vmatpush.msra.mxu0 %v223
    %885 = vmatpush.msra.mxu0 %v222
    %886 = vmatpush.msra.mxu0 %v221
    %887 = vmatpush.msra.mxu0 %v220
    %888 = vmatpush.msra.mxu0 %v219
    %889 = vmatpush.msra.mxu0 %v218
    %890 = vmatpush.msra.mxu0 %v217
    %891 = vmatpush.msra.mxu0 %v216
    %892 = vmatmul.f32.gmra.mxu0 %v807
    %v893 = vpop.f32.mrf.mxu0
    %v894 = vadd.f32 %v874, %v893
    %895 = vdwg.mxu0
    %v896 = vadd.f32 %v147, %v894
    %v897 = vmul.f32 %v145, %v896
    %v898 = vtanh.pop %v897
    %v899 = vmul.f32 %v145, %v898
    %v900 = vadd.f32 %v899, %v146
    %901 = vrot.lane.b32.xlu0 %v900, 96
    %v902 = vpop.permute.xlu0 %901
    %903 = vrot.lane.b32.xlu0 %v900, 64
    %v904 = vpop.permute.xlu0 %903
    %905 = vrot.lane.b32.xlu0 %v900, 32
    %v906 = vpop.permute.xlu0 %905
    %v907 = vmul.f32 %v902, %v805
    %v908 = vmul.f32 %v900, %v906
    %v909 = vadd.f32 %v907, %v908
    %v910 = vtanh.pop %v909
    %v911 = vmul.f32 %v904, %v910
    %912 = vmatpush.msra.mxu0 %v163
    %913 = vmatpush.msra.mxu0 %v162
    %914 = vmatpush.msra.mxu0 %v161
    %915 = vmatpush.msra.mxu0 %v160
    %916 = vmatpush.msra.mxu0 %v159
    %917 = vmatpush.msra.mxu0 %v158
    %918 = vmatpush.msra.mxu0 %v157
    %919 = vmatpush.msra.mxu0 %v156
    %920 = vmatpush.msra.mxu0 %v155
    %921 = vmatpush.msra.mxu0 %v154
    %922 = vmatpush.msra.mxu0 %v153
    %923 = vmatpush.msra.mxu0 %v152
    %924 = vmatpush.msra.mxu0 %v151
    %925 = vmatpush.msra.mxu0 %v150
    %926 = vmatpush.msra.mxu0 %v149
    %927 = vmatpush.msra.mxu0 %v148
    %928 = vmatmul.f32.gmra.mxu0 %v855
    %v929 = vpop.f32.mrf.mxu0
    %v930 = vadd.f32 0.0, %v929
    %931 = vdwg.mxu0
    %v933 = vrot.slane %v930, 1
    %v935 = vadd.f32 %v140, %v933
    %v936 = vmul.f32 %v145, %v935
    %v937 = vtanh.pop %v936
    %v938 = vmul.f32 %v145, %v937
    %v939 = vadd.f32 %v938, %v146
    %v941 = vrot.slane %v939, 7
    %943 = vrot.lane.b32.xlu0 %v941, 96
    %v944 = vpop.permute.xlu0 %943
    %945 = vrot.lane.b32.xlu0 %v941, 64
    %v946 = vpop.permute.xlu0 %945
    %947 = vrot.lane.b32.xlu0 %v941, 32
    %v948 = vpop.permute.xlu0 %947
    %v949 = vmul.f32 %v944, %v853
    %v951 = vrot.slane %v948, 1
    %v953 = vmul.f32 %v939, %v951
    %v955 = vrot.slane %v953, 7
    %v957 = vadd.f32 %v949, %v955
    %v958 = vtanh.pop %v957
    %v959 = vmul.f32 %v946, %v958
    %960 = vmatpush.msra.mxu0 %v215
    %961 = vmatpush.msra.mxu0 %v214
    %962 = vmatpush.msra.mxu0 %v213
    %963 = vmatpush.msra.mxu0 %v212
    %964 = vmatpush.msra.mxu0 %v211
    %965 = vmatpush.msra.mxu0 %v210
    %966 = vmatpush.msra.mxu0 %v209
    %967 = vmatpush.msra.mxu0 %v208
    %968 = vmatpush.msra.mxu0 %v207
    %969 = vmatpush.msra.mxu0 %v206
    %970 = vmatpush.msra.mxu0 %v205
    %971 = vmatpush.msra.mxu0 %v204
    %972 = vmatpush.msra.mxu0 %v203
    %973 = vmatpush.msra.mxu0 %v202
    %974 = vmatpush.msra.mxu0 %v201
    %975 = vmatpush.msra.mxu0 %v200
    %976 = vmatmul.f32.gmra.mxu0 %v959
    %v977 = vpop.f32.mrf.mxu0
    %v978 = vadd.f32 0.0, %v977
    %979 = vdwg.mxu0
    %980 = vmatpush.msra.mxu0 %v231
    %981 = vmatpush.msra.mxu0 %v230
    %982 = vmatpush.msra.mxu0 %v229
    %983 = vmatpush.msra.mxu0 %v228
    %984 = vmatpush.msra.mxu0 %v227
    %985 = vmatpush.msra.mxu0 %v226
    %986 = vmatpush.msra.mxu0 %v225
    %987 = vmatpush.msra.mxu0 %v224
    %988 = vmatpush.msra.mxu0 %v223
    %989 = vmatpush.msra.mxu0 %v222
    %990 = vmatpush.msra.mxu0 %v221
    %991 = vmatpush.msra.mxu0 %v220
    %992 = vmatpush.msra.mxu0 %v219
    %993 = vmatpush.msra.mxu0 %v218
    %994 = vmatpush.msra.mxu0 %v217
    %995 = vmatpush.msra.mxu0 %v216
    %996 = vmatmul.f32.gmra.mxu0 %v911
    %v997 = vpop.f32.mrf.mxu0
    %v998 = vadd.f32 %v978, %v997
    %999 = vdwg.mxu0
    %v1000 = vadd.f32 %v147, %v998
    %v1001 = vmul.f32 %v145, %v1000
    %v1002 = vtanh.pop %v1001
    %v1003 = vmul.f32 %v145, %v1002
    %v1004 = vadd.f32 %v1003, %v146
    %1005 = vrot.lane.b32.xlu0 %v1004, 96
    %v1006 = vpop.permute.xlu0 %1005
    %1007 = vrot.lane.b32.xlu0 %v1004, 64
    %v1008 = vpop.permute.xlu0 %1007
    %1009 = vrot.lane.b32.xlu0 %v1004, 32
    %v1010 = vpop.permute.xlu0 %1009
    %v1011 = vmul.f32 %v1006, %v909
    %v1012 = vmul.f32 %v1004, %v1010
    %v1013 = vadd.f32 %v1011, %v1012
    %v1014 = vtanh.pop %v1013
    %v1015 = vmul.f32 %v1008, %v1014
    %s1016 = smul.u32 2, 128
    %s1017 = smul.u32 %s1016, 1
    %s1018 = sshll.u32 %s1017, 4
    %1019 = dma.done [#allocation3], %s1018
    %v1020 = vld [vmem:[%s7] sm:$0x1]
    %vm1021 = vcmp.ge.s32.totalorder %v143, 0
    %vm1022 = vcmp.lt.s32.totalorder %v143, 32
    %vm1023 = vmand %vm1021, %vm1022
    %v1024 = vsel %vm1023, %v287, 0.0
    %1025 = vrot.lane.b32.xlu0 %v391, 32
    %v1026 = vpop.permute.xlu0 %1025
    %vm1027 = vcmp.ge.s32.totalorder %v143, 32
    %vm1028 = vcmp.lt.s32.totalorder %v143, 64
    %vm1029 = vmand %vm1027, %vm1028
    %v1030 = vsel %vm1029, %v1026, %v1024
    %1031 = vrot.lane.b32.xlu0 %v495, 64
    %v1032 = vpop.permute.xlu0 %1031
    %vm1033 = vcmp.ge.s32.totalorder %v143, 64
    %vm1034 = vmand %vm1033, %vm144
    %v1035 = vsel %vm1034, %v1032, %v1030
    %1036 = vrot.lane.b32.xlu0 %v599, 96
    %v1037 = vpop.permute.xlu0 %1036
    %vm1038 = vcmp.ge.s32.totalorder %v143, 96
    %vm1039 = vcmp.lt.s32.totalorder %v143, 128
    %vm1040 = vmand %vm1038, %vm1039
    %v1041 = vsel %vm1040, %v1037, %v1035
    %v1042 = vld [vmem:[#allocation2] sm:$0xff]
    %v1043 = vld [vmem:[#allocation2 + $0x8] sm:$0xff]
    %v1044 = vld [vmem:[#allocation2 + $0x10] sm:$0xff]
    %v1045 = vld [vmem:[#allocation2 + $0x18] sm:$0xff]
    %v1046 = vld [vmem:[#allocation2 + $0x20] sm:$0xff]
    %v1047 = vld [vmem:[#allocation2 + $0x28] sm:$0xff]
    %v1048 = vld [vmem:[#allocation2 + $0x30] sm:$0xff]
    %v1049 = vld [vmem:[#allocation2 + $0x38] sm:$0xff]
    %v1050 = vld [vmem:[#allocation2 + $0x40] sm:$0xff]
    %v1051 = vld [vmem:[#allocation2 + $0x48] sm:$0xff]
    %v1052 = vld [vmem:[#allocation2 + $0x50] sm:$0xff]
    %v1053 = vld [vmem:[#allocation2 + $0x58] sm:$0xff]
    %v1054 = vld [vmem:[#allocation2 + $0x60] sm:$0xff]
    %v1055 = vld [vmem:[#allocation2 + $0x68] sm:$0xff]
    %v1056 = vld [vmem:[#allocation2 + $0x70] sm:$0xff]
    %v1057 = vld [vmem:[#allocation2 + $0x78] sm:$0xff]
    %1058 = vmatpush.msra.mxu0 %v1057
    %1059 = vmatpush.msra.mxu0 %v1056
    %1060 = vmatpush.msra.mxu0 %v1055
    %1061 = vmatpush.msra.mxu0 %v1054
    %1062 = vmatpush.msra.mxu0 %v1053
    %1063 = vmatpush.msra.mxu0 %v1052
    %1064 = vmatpush.msra.mxu0 %v1051
    %1065 = vmatpush.msra.mxu0 %v1050
    %1066 = vmatpush.msra.mxu0 %v1049
    %1067 = vmatpush.msra.mxu0 %v1048
    %1068 = vmatpush.msra.mxu0 %v1047
    %1069 = vmatpush.msra.mxu0 %v1046
    %1070 = vmatpush.msra.mxu0 %v1045
    %1071 = vmatpush.msra.mxu0 %v1044
    %1072 = vmatpush.msra.mxu0 %v1043
    %1073 = vmatpush.msra.mxu0 %v1042
    %1074 = vmatmul.f32.gmra.mxu0 %v1041
    %v1075 = vpop.f32.mrf.mxu0
    %v1076 = vadd.f32 0.0, %v1075
    %1077 = vdwg.mxu0
    %v1078 = vadd.f32 %v1020, %v1076
    %v1079 = vsel %vm1023, %v703, 0.0
    %1080 = vrot.lane.b32.xlu0 %v807, 32
    %v1081 = vpop.permute.xlu0 %1080
    %v1082 = vsel %vm1029, %v1081, %v1079
    %1083 = vrot.lane.b32.xlu0 %v911, 64
    %v1084 = vpop.permute.xlu0 %1083
    %v1085 = vsel %vm1034, %v1084, %v1082
    %1086 = vrot.lane.b32.xlu0 %v1015, 96
    %v1087 = vpop.permute.xlu0 %1086
    %v1088 = vsel %vm1040, %v1087, %v1085
    %s1089 = scalar_lea.vmem [#allocation2], 128
    %v1090 = vld [vmem:[%s1089] sm:$0xff]
    %v1091 = vld [vmem:[%s1089 + $0x8] sm:$0xff]
    %v1092 = vld [vmem:[%s1089 + $0x10] sm:$0xff]
    %v1093 = vld [vmem:[%s1089 + $0x18] sm:$0xff]
    %v1094 = vld [vmem:[%s1089 + $0x20] sm:$0xff]
    %v1095 = vld [vmem:[%s1089 + $0x28] sm:$0xff]
    %v1096 = vld [vmem:[%s1089 + $0x30] sm:$0xff]
    %v1097 = vld [vmem:[%s1089 + $0x38] sm:$0xff]
    %v1098 = vld [vmem:[%s1089 + $0x40] sm:$0xff]
    %v1099 = vld [vmem:[%s1089 + $0x48] sm:$0xff]
    %v1100 = vld [vmem:[%s1089 + $0x50] sm:$0xff]
    %v1101 = vld [vmem:[%s1089 + $0x58] sm:$0xff]
    %v1102 = vld [vmem:[%s1089 + $0x60] sm:$0xff]
    %v1103 = vld [vmem:[%s1089 + $0x68] sm:$0xff]
    %v1104 = vld [vmem:[%s1089 + $0x70] sm:$0xff]
    %v1105 = vld [vmem:[%s1089 + $0x78] sm:$0xff]
    %1106 = vmatpush.msra.mxu0 %v1105
    %1107 = vmatpush.msra.mxu0 %v1104
    %1108 = vmatpush.msra.mxu0 %v1103
    %1109 = vmatpush.msra.mxu0 %v1102
    %1110 = vmatpush.msra.mxu0 %v1101
    %1111 = vmatpush.msra.mxu0 %v1100
    %1112 = vmatpush.msra.mxu0 %v1099
    %1113 = vmatpush.msra.mxu0 %v1098
    %1114 = vmatpush.msra.mxu0 %v1097
    %1115 = vmatpush.msra.mxu0 %v1096
    %1116 = vmatpush.msra.mxu0 %v1095
    %1117 = vmatpush.msra.mxu0 %v1094
    %1118 = vmatpush.msra.mxu0 %v1093
    %1119 = vmatpush.msra.mxu0 %v1092
    %1120 = vmatpush.msra.mxu0 %v1091
    %1121 = vmatpush.msra.mxu0 %v1090
    %1122 = vmatmul.f32.gmra.mxu0 %v1088
    %v1123 = vpop.f32.mrf.mxu0
    %v1124 = vadd.f32 0.0, %v1123
    %1125 = vdwg.mxu0
    %v1126 = vadd.f32 %v1078, %v1124
    %1127 = vst [vmem:[%s8] sm:$0x1] %v1126
    // Predicated region
    $region54: #{lstm_autoencoder_forward.1} parent=1 // pred_check
      _
    $region55: #{lstm_autoencoder_forward.1} parent=1 // pred_check_branch
      %1129 = sbr.rel (0) target = $region57
    $region56: #{lstm_autoencoder_forward.1} parent=1 // pred_region
      _
    $region57: #{lstm_autoencoder_forward.1} parent=1 // pred_fallthru
      _
    // Predicated region
    $region58: #{lstm_autoencoder_forward.1} parent=1 // pred_check
      _
    $region59: #{lstm_autoencoder_forward.1} parent=1 // pred_check_branch
      %1131 = sbr.rel (0) target = $region61
    $region60: #{lstm_autoencoder_forward.1} parent=1 // pred_region
      _
    $region61: #{lstm_autoencoder_forward.1} parent=1 // pred_fallthru
      _
    %1132 = vsyncpa [#allocation5], 1
    %1133 = vsyncpa [#allocation7], 1
    %1134 = vsyncpa [#allocation10], 1
  %1135 = vsyncmov [#allocation3]
  %s1136 = vpop.sfrf %1135
  %p1137 = scmp.eq.s32.totalorder %s1136, 0
  %p1138 = pneg %p1137
  %1140 = shalt.err (%p1138)

</llo_original>
